<compile_context>
chip_gen: v5e
topology: v5e:2x2
jax: 0.10.0
libtpu: 0.0.40
codegen_flags: <defaults>
</compile_context>

<pallas_src>
import functools

import numpy as np
import jax
import jax.numpy as jnp
from jax.experimental import pallas as pl
from jax.experimental.pallas import tpu as pltpu


def _conv3x3_gelu_kernel(x_ref, w_ref, b_ref, m_ref, o_ref, *, W):
    """3x3 same-conv + exact GELU on a fused (channels, batch*spatial) block.

    x_ref: (Cin, P)        input, P = images_per_block * H * W lanes
    w_ref: (9, Cout, Cin)  conv weights, tap-major (ky, kx row-major)
    b_ref: (Cout, 1)       conv bias
    m_ref: (9, P)          0/1 border-validity masks (input dtype), per tap
    o_ref: (Cout, P)       output
    """
    Cout = o_ref.shape[0]
    P = x_ref.shape[1]

    x = x_ref[...]                                            # (Cin, P)
    acc = jnp.zeros((Cout, P), jnp.float32)

    # Nine accumulating matmuls; only one shifted/masked copy is live at a time.
    tap = 0
    for dy in (-1, 0, 1):
        for dx in (-1, 0, 1):
            s = dy * W + dx                                   # flat-index shift
            if s == 0:
                masked = x                                    # center tap: always valid
            else:
                shifted = pltpu.roll(x, shift=(-s) % P, axis=1)      # XLU slot
                masked = shifted * m_ref[pl.ds(tap, 1), :]           # (1,P) broadcast mul
            acc = acc + jnp.dot(w_ref[tap], masked,
                                preferred_element_type=jnp.float32)  # MXU, f32 acc
            tap += 1

    acc = acc + b_ref[...].astype(jnp.float32)

    # Exact (erf-based) GELU, matching torch.nn.GELU() default.
    y = 0.5 * acc * (1.0 + jax.lax.erf(acc * 0.7071067811865476))
    o_ref[...] = y.astype(o_ref.dtype)                        # lane-dense store


def _block_vmem_bytes(Cin, Cout, P, itemsize):
    """Rough per-step VMEM footprint used for block-size / limit selection."""
    xio = 2 * (Cin + Cout) * P * itemsize          # double-buffered in/out blocks
    masks = 2 * 9 * P * itemsize                   # (9, P) tap masks
    params = 2 * (9 * Cout * Cin + Cout) * itemsize
    acc = Cout * P * 4                             # f32 accumulator
    temps = 3 * Cin * P * 4                        # shifted/masked live copies (+margin)
    return xio + masks + params + acc + temps


def _physical_vmem_bytes():
    try:
        return int(pltpu.get_tpu_info().vmem_capacity_bytes)
    except Exception:
        return 64 * 1024 * 1024                    # conservative default (v7x)


def _choose_images_per_block(N, HW, Cin, Cout, itemsize, budget, target_lanes=2048):
    """Smallest divisor of N whose fused lane slab reaches target_lanes while
    staying within the VMEM budget (else the largest feasible divisor)."""
    best = None
    for d in range(1, N + 1):
        if N % d:
            continue
        P = d * HW
        if (P % 128 != 0) and (d != N):
            continue                               # keep lane block (8,128)-legal
        if _block_vmem_bytes(Cin, Cout, P, itemsize) > budget:
            break                                  # blocks only grow with d
        best = d
        if P >= target_lanes:
            break
    if best is None:
        # TODO(synk): halo'd spatial tiling when even a single image overflows VMEM.
        best = 1 if (HW % 128 == 0 or N == 1) else N
    return best


def _tap_masks(H, W, images_per_block, dtype):
    """(9, images_per_block*H*W) 0/1 border-validity masks, tap-major order."""
    ys = np.arange(H).reshape(H, 1)
    xs = np.arange(W).reshape(1, W)
    rows = []
    for dy in (-1, 0, 1):
        for dx in (-1, 0, 1):
            valid = ((ys + dy >= 0) & (ys + dy < H) &
                     (xs + dx >= 0) & (xs + dx < W))
            rows.append(valid.reshape(-1))
    m = np.stack(rows, axis=0).astype(np.float32)      # (9, H*W)
    m = np.tile(m, (1, images_per_block))              # (9, P)
    return jnp.asarray(m, dtype=dtype)


@jax.jit
def feedforward_forward(x_nchw, conv_w, conv_b):
    """FeedForward.forward: GELU(Conv2d(dim, dim, 3, stride=1, padding=1)(x)).

    x_nchw: (N, C, H, W)   conv_w: (Cout, Cin, 3, 3)   conv_b: (Cout,)
    returns (N, C, H, W)
    """
    N, C, H, W = x_nchw.shape
    Cout, Cin, KH, KW = conv_w.shape
    assert (KH, KW) == (3, 3) and Cin == C and Cout == C
    HW = H * W
    itemsize = jnp.dtype(x_nchw.dtype).itemsize

    phys_vmem = _physical_vmem_bytes()
    budget = phys_vmem // 3                           # per-step block budget
    ipb = _choose_images_per_block(N, HW, Cin, Cout, itemsize, budget)
    P = ipb * HW
    need = _block_vmem_bytes(Cin, Cout, P, itemsize)
    vmem_limit = int(min(max(2 * need, 16 * 1024 * 1024), (3 * phys_vmem) // 4))

    # Channels on sublanes, fused batch*spatial on lanes.
    x_fused = jnp.transpose(x_nchw.reshape(N, C, HW), (1, 0, 2)).reshape(C, N * HW)
    # (Cout, Cin, ky, kx) -> (9, Cout, Cin); tap index = ky*3 + kx.
    w_taps = jnp.transpose(conv_w, (2, 3, 0, 1)).reshape(9, Cout, Cin)
    b_mat = conv_b.reshape(Cout, 1)
    masks = _tap_masks(H, W, ipb, x_nchw.dtype)       # (9, P), compile-time constant

    out_fused = pl.pallas_call(
        functools.partial(_conv3x3_gelu_kernel, W=W),
        out_shape=jax.ShapeDtypeStruct((Cout, N * HW), x_nchw.dtype),
        grid_spec=pltpu.PrefetchScalarGridSpec(
            num_scalar_prefetch=0,
            grid=(N // ipb,),
            in_specs=[
                pl.BlockSpec((Cin, P), lambda g: (0, g)),
                pl.BlockSpec((9, Cout, Cin), lambda g: (0, 0, 0)),
                pl.BlockSpec((Cout, 1), lambda g: (0, 0)),
                pl.BlockSpec((9, P), lambda g: (0, 0)),
            ],
            out_specs=pl.BlockSpec((Cout, P), lambda g: (0, g)),
        ),
        compiler_params=pltpu.CompilerParams(
            dimension_semantics=("parallel",),
            vmem_limit_bytes=vmem_limit,
        ),
    )(x_fused, w_taps, b_mat, masks)

    # Back to NCHW.
    return jnp.transpose(out_fused.reshape(Cout, N, HW), (1, 0, 2)).reshape(N, Cout, H, W)


def _reference_forward(x_nchw, conv_w, conv_b):
    """Pure-JAX reference: Conv2d(3x3, pad=1) + exact GELU, in NCHW."""
    y = jax.lax.conv_general_dilated(
        x_nchw.astype(jnp.float32),
        conv_w.astype(jnp.float32),
        window_strides=(1, 1),
        padding=((1, 1), (1, 1)),
        dimension_numbers=("NCHW", "OIHW", "NCHW"),
    ) + conv_b.astype(jnp.float32)[None, :, None, None]
    return jax.nn.gelu(y, approximate=False).astype(x_nchw.dtype)


if __name__ == "__main__":
    # Small shapes consistent with FeedForward: dim channels, NCHW input.
    N, dim, H, W = 2, 4, 16, 16

    key = jax.random.PRNGKey(0)
    kx, kw, kb = jax.random.split(key, 3)

    x = jax.random.normal(kx, (N, dim, H, W), dtype=jnp.float32)
    # Deterministic synthetic params for nn.Conv2d(dim, dim, 3, padding=1).
    fan_in = dim * 3 * 3
    bound = 1.0 / (fan_in ** 0.5)
    conv_w = jax.random.uniform(kw, (dim, dim, 3, 3), jnp.float32, -bound, bound)
    conv_b = jax.random.uniform(kb, (dim,), jnp.float32, -bound, bound)

    out = feedforward_forward(x, conv_w, conv_b)
    out = jax.block_until_ready(out)

    ref = _reference_forward(x, conv_w, conv_b)
    assert out.shape == (N, dim, H, W)
    assert jnp.allclose(out, ref, atol=1e-4, rtol=1e-4), "mismatch vs reference"

    print("KERNEL_OK")
</pallas_src>

<mosaic_0001>
module attributes {stable_mosaic.version = 11 : i64} {
  func.func @_conv3x3_gelu_kernel(%arg0: i32, %arg1: memref<4x512xf32, #tpu.memory_space<vmem>>, %arg2: memref<9x4x4xf32, #tpu.memory_space<vmem>>, %arg3: memref<4x1xf32, #tpu.memory_space<vmem>>, %arg4: memref<9x512xf32, #tpu.memory_space<vmem>>, %arg5: memref<4x512xf32, #tpu.memory_space<vmem>>) attributes {dimension_semantics = [#tpu.dimension_semantics<parallel>], iteration_bounds = array<i64: 1>, scalar_prefetch = 0 : i64, scratch_operands = 0 : i64, tpu.core_type = #tpu.core_type<tc>, window_params = [{transform_indices = @transform_0, window_bounds = array<i64: 4, 512>}, {pipeline_mode = #tpu.pipeline_mode<synchronous>, transform_indices = @transform_1, window_bounds = array<i64: 9, 4, 4>}, {pipeline_mode = #tpu.pipeline_mode<synchronous>, transform_indices = @transform_2, window_bounds = array<i64: 4, 1>}, {pipeline_mode = #tpu.pipeline_mode<synchronous>, transform_indices = @transform_3, window_bounds = array<i64: 9, 512>}, {transform_indices = @transform_4, window_bounds = array<i64: 4, 512>}]} {
    %c0 = arith.constant 0 : index
    %c0_0 = arith.constant 0 : index
    %0 = vector.load %arg1[%c0, %c0_0] : memref<4x512xf32, #tpu.memory_space<vmem>>, vector<4x512xf32>
    %cst = arith.constant 0.000000e+00 : f32
    %1 = vector.broadcast %cst : f32 to vector<4x512xf32>
    %c17_i32 = arith.constant 17 : i32
    %2 = tpu.dynamic_rotate %0 by %c17_i32 dim 1 : vector<4x512xf32>, i32 -> vector<4x512xf32>
    %c0_1 = arith.constant 0 : index
    %c0_2 = arith.constant 0 : index
    %3 = vector.load %arg4[%c0_1, %c0_2] : memref<9x512xf32, #tpu.memory_space<vmem>>, vector<1x512xf32>
    %4 = vector.broadcast %3 : vector<1x512xf32> to vector<4x512xf32>
    %5 = arith.mulf %2, %4 : vector<4x512xf32>
    %c0_3 = arith.constant 0 : index
    %c0_4 = arith.constant 0 : index
    %c0_5 = arith.constant 0 : index
    %6 = vector.load %arg2[%c0_3, %c0_4, %c0_5] : memref<9x4x4xf32, #tpu.memory_space<vmem>>, vector<1x4x4xf32>
    %7 = vector.shape_cast %6 : vector<1x4x4xf32> to vector<4x4xf32>
    %cst_6 = arith.constant dense<0.000000e+00> : vector<4x512xf32>
    %8 = tpu.matmul %7, %5, %cst_6 {dimension_numbers = #tpu.dot_dimension_numbers<[1], [0], [0], [1], [0, 0, 1, 1], [], []>} : vector<4x4xf32>, vector<4x512xf32>, vector<4x512xf32> -> vector<4x512xf32>
    %9 = arith.addf %1, %8 : vector<4x512xf32>
    %c16_i32 = arith.constant 16 : i32
    %10 = tpu.dynamic_rotate %0 by %c16_i32 dim 1 : vector<4x512xf32>, i32 -> vector<4x512xf32>
    %c1 = arith.constant 1 : index
    %c0_7 = arith.constant 0 : index
    %11 = vector.load %arg4[%c1, %c0_7] : memref<9x512xf32, #tpu.memory_space<vmem>>, vector<1x512xf32>
    %12 = vector.broadcast %11 : vector<1x512xf32> to vector<4x512xf32>
    %13 = arith.mulf %10, %12 : vector<4x512xf32>
    %c1_8 = arith.constant 1 : index
    %c0_9 = arith.constant 0 : index
    %c0_10 = arith.constant 0 : index
    %14 = vector.load %arg2[%c1_8, %c0_9, %c0_10] : memref<9x4x4xf32, #tpu.memory_space<vmem>>, vector<1x4x4xf32>
    %15 = vector.shape_cast %14 : vector<1x4x4xf32> to vector<4x4xf32>
    %cst_11 = arith.constant dense<0.000000e+00> : vector<4x512xf32>
    %16 = tpu.matmul %15, %13, %cst_11 {dimension_numbers = #tpu.dot_dimension_numbers<[1], [0], [0], [1], [0, 0, 1, 1], [], []>} : vector<4x4xf32>, vector<4x512xf32>, vector<4x512xf32> -> vector<4x512xf32>
    %17 = arith.addf %9, %16 : vector<4x512xf32>
    %c15_i32 = arith.constant 15 : i32
    %18 = tpu.dynamic_rotate %0 by %c15_i32 dim 1 : vector<4x512xf32>, i32 -> vector<4x512xf32>
    %c2 = arith.constant 2 : index
    %c0_12 = arith.constant 0 : index
    %19 = vector.load %arg4[%c2, %c0_12] : memref<9x512xf32, #tpu.memory_space<vmem>>, vector<1x512xf32>
    %20 = vector.broadcast %19 : vector<1x512xf32> to vector<4x512xf32>
    %21 = arith.mulf %18, %20 : vector<4x512xf32>
    %c2_13 = arith.constant 2 : index
    %c0_14 = arith.constant 0 : index
    %c0_15 = arith.constant 0 : index
    %22 = vector.load %arg2[%c2_13, %c0_14, %c0_15] : memref<9x4x4xf32, #tpu.memory_space<vmem>>, vector<1x4x4xf32>
    %23 = vector.shape_cast %22 : vector<1x4x4xf32> to vector<4x4xf32>
    %cst_16 = arith.constant dense<0.000000e+00> : vector<4x512xf32>
    %24 = tpu.matmul %23, %21, %cst_16 {dimension_numbers = #tpu.dot_dimension_numbers<[1], [0], [0], [1], [0, 0, 1, 1], [], []>} : vector<4x4xf32>, vector<4x512xf32>, vector<4x512xf32> -> vector<4x512xf32>
    %25 = arith.addf %17, %24 : vector<4x512xf32>
    %c1_i32 = arith.constant 1 : i32
    %26 = tpu.dynamic_rotate %0 by %c1_i32 dim 1 : vector<4x512xf32>, i32 -> vector<4x512xf32>
    %c3 = arith.constant 3 : index
    %c0_17 = arith.constant 0 : index
    %27 = vector.load %arg4[%c3, %c0_17] : memref<9x512xf32, #tpu.memory_space<vmem>>, vector<1x512xf32>
    %28 = vector.broadcast %27 : vector<1x512xf32> to vector<4x512xf32>
    %29 = arith.mulf %26, %28 : vector<4x512xf32>
    %c3_18 = arith.constant 3 : index
    %c0_19 = arith.constant 0 : index
    %c0_20 = arith.constant 0 : index
    %30 = vector.load %arg2[%c3_18, %c0_19, %c0_20] : memref<9x4x4xf32, #tpu.memory_space<vmem>>, vector<1x4x4xf32>
    %31 = vector.shape_cast %30 : vector<1x4x4xf32> to vector<4x4xf32>
    %cst_21 = arith.constant dense<0.000000e+00> : vector<4x512xf32>
    %32 = tpu.matmul %31, %29, %cst_21 {dimension_numbers = #tpu.dot_dimension_numbers<[1], [0], [0], [1], [0, 0, 1, 1], [], []>} : vector<4x4xf32>, vector<4x512xf32>, vector<4x512xf32> -> vector<4x512xf32>
    %33 = arith.addf %25, %32 : vector<4x512xf32>
    %c4 = arith.constant 4 : index
    %c0_22 = arith.constant 0 : index
    %c0_23 = arith.constant 0 : index
    %34 = vector.load %arg2[%c4, %c0_22, %c0_23] : memref<9x4x4xf32, #tpu.memory_space<vmem>>, vector<1x4x4xf32>
    %35 = vector.shape_cast %34 : vector<1x4x4xf32> to vector<4x4xf32>
    %cst_24 = arith.constant dense<0.000000e+00> : vector<4x512xf32>
    %36 = tpu.matmul %35, %0, %cst_24 {dimension_numbers = #tpu.dot_dimension_numbers<[1], [0], [0], [1], [0, 0, 1, 1], [], []>} : vector<4x4xf32>, vector<4x512xf32>, vector<4x512xf32> -> vector<4x512xf32>
    %37 = arith.addf %33, %36 : vector<4x512xf32>
    %c511_i32 = arith.constant 511 : i32
    %38 = tpu.dynamic_rotate %0 by %c511_i32 dim 1 : vector<4x512xf32>, i32 -> vector<4x512xf32>
    %c5 = arith.constant 5 : index
    %c0_25 = arith.constant 0 : index
    %39 = vector.load %arg4[%c5, %c0_25] : memref<9x512xf32, #tpu.memory_space<vmem>>, vector<1x512xf32>
    %40 = vector.broadcast %39 : vector<1x512xf32> to vector<4x512xf32>
    %41 = arith.mulf %38, %40 : vector<4x512xf32>
    %c5_26 = arith.constant 5 : index
    %c0_27 = arith.constant 0 : index
    %c0_28 = arith.constant 0 : index
    %42 = vector.load %arg2[%c5_26, %c0_27, %c0_28] : memref<9x4x4xf32, #tpu.memory_space<vmem>>, vector<1x4x4xf32>
    %43 = vector.shape_cast %42 : vector<1x4x4xf32> to vector<4x4xf32>
    %cst_29 = arith.constant dense<0.000000e+00> : vector<4x512xf32>
    %44 = tpu.matmul %43, %41, %cst_29 {dimension_numbers = #tpu.dot_dimension_numbers<[1], [0], [0], [1], [0, 0, 1, 1], [], []>} : vector<4x4xf32>, vector<4x512xf32>, vector<4x512xf32> -> vector<4x512xf32>
    %45 = arith.addf %37, %44 : vector<4x512xf32>
    %c497_i32 = arith.constant 497 : i32
    %46 = tpu.dynamic_rotate %0 by %c497_i32 dim 1 : vector<4x512xf32>, i32 -> vector<4x512xf32>
    %c6 = arith.constant 6 : index
    %c0_30 = arith.constant 0 : index
    %47 = vector.load %arg4[%c6, %c0_30] : memref<9x512xf32, #tpu.memory_space<vmem>>, vector<1x512xf32>
    %48 = vector.broadcast %47 : vector<1x512xf32> to vector<4x512xf32>
    %49 = arith.mulf %46, %48 : vector<4x512xf32>
    %c6_31 = arith.constant 6 : index
    %c0_32 = arith.constant 0 : index
    %c0_33 = arith.constant 0 : index
    %50 = vector.load %arg2[%c6_31, %c0_32, %c0_33] : memref<9x4x4xf32, #tpu.memory_space<vmem>>, vector<1x4x4xf32>
    %51 = vector.shape_cast %50 : vector<1x4x4xf32> to vector<4x4xf32>
    %cst_34 = arith.constant dense<0.000000e+00> : vector<4x512xf32>
    %52 = tpu.matmul %51, %49, %cst_34 {dimension_numbers = #tpu.dot_dimension_numbers<[1], [0], [0], [1], [0, 0, 1, 1], [], []>} : vector<4x4xf32>, vector<4x512xf32>, vector<4x512xf32> -> vector<4x512xf32>
    %53 = arith.addf %45, %52 : vector<4x512xf32>
    %c496_i32 = arith.constant 496 : i32
    %54 = tpu.dynamic_rotate %0 by %c496_i32 dim 1 : vector<4x512xf32>, i32 -> vector<4x512xf32>
    %c7 = arith.constant 7 : index
    %c0_35 = arith.constant 0 : index
    %55 = vector.load %arg4[%c7, %c0_35] : memref<9x512xf32, #tpu.memory_space<vmem>>, vector<1x512xf32>
    %56 = vector.broadcast %55 : vector<1x512xf32> to vector<4x512xf32>
    %57 = arith.mulf %54, %56 : vector<4x512xf32>
    %c7_36 = arith.constant 7 : index
    %c0_37 = arith.constant 0 : index
    %c0_38 = arith.constant 0 : index
    %58 = vector.load %arg2[%c7_36, %c0_37, %c0_38] : memref<9x4x4xf32, #tpu.memory_space<vmem>>, vector<1x4x4xf32>
    %59 = vector.shape_cast %58 : vector<1x4x4xf32> to vector<4x4xf32>
    %cst_39 = arith.constant dense<0.000000e+00> : vector<4x512xf32>
    %60 = tpu.matmul %59, %57, %cst_39 {dimension_numbers = #tpu.dot_dimension_numbers<[1], [0], [0], [1], [0, 0, 1, 1], [], []>} : vector<4x4xf32>, vector<4x512xf32>, vector<4x512xf32> -> vector<4x512xf32>
    %61 = arith.addf %53, %60 : vector<4x512xf32>
    %c495_i32 = arith.constant 495 : i32
    %62 = tpu.dynamic_rotate %0 by %c495_i32 dim 1 : vector<4x512xf32>, i32 -> vector<4x512xf32>
    %c8 = arith.constant 8 : index
    %c0_40 = arith.constant 0 : index
    %63 = vector.load %arg4[%c8, %c0_40] : memref<9x512xf32, #tpu.memory_space<vmem>>, vector<1x512xf32>
    %64 = vector.broadcast %63 : vector<1x512xf32> to vector<4x512xf32>
    %65 = arith.mulf %62, %64 : vector<4x512xf32>
    %c8_41 = arith.constant 8 : index
    %c0_42 = arith.constant 0 : index
    %c0_43 = arith.constant 0 : index
    %66 = vector.load %arg2[%c8_41, %c0_42, %c0_43] : memref<9x4x4xf32, #tpu.memory_space<vmem>>, vector<1x4x4xf32>
    %67 = vector.shape_cast %66 : vector<1x4x4xf32> to vector<4x4xf32>
    %cst_44 = arith.constant dense<0.000000e+00> : vector<4x512xf32>
    %68 = tpu.matmul %67, %65, %cst_44 {dimension_numbers = #tpu.dot_dimension_numbers<[1], [0], [0], [1], [0, 0, 1, 1], [], []>} : vector<4x4xf32>, vector<4x512xf32>, vector<4x512xf32> -> vector<4x512xf32>
    %69 = arith.addf %61, %68 : vector<4x512xf32>
    %c0_45 = arith.constant 0 : index
    %c0_46 = arith.constant 0 : index
    %70 = vector.load %arg3[%c0_45, %c0_46] : memref<4x1xf32, #tpu.memory_space<vmem>>, vector<4x1xf32>
    %71 = vector.broadcast %70 : vector<4x1xf32> to vector<4x512xf32>
    %72 = arith.addf %69, %71 : vector<4x512xf32>
    %cst_47 = arith.constant 5.000000e-01 : f32
    %73 = vector.broadcast %cst_47 : f32 to vector<4x512xf32>
    %74 = arith.mulf %73, %72 : vector<4x512xf32>
    %cst_48 = arith.constant 0.707106769 : f32
    %75 = vector.broadcast %cst_48 : f32 to vector<4x512xf32>
    %76 = arith.mulf %72, %75 : vector<4x512xf32>
    %77 = math.erf %76 : vector<4x512xf32>
    %cst_49 = arith.constant 1.000000e+00 : f32
    %78 = vector.broadcast %cst_49 : f32 to vector<4x512xf32>
    %79 = arith.addf %78, %77 : vector<4x512xf32>
    %80 = arith.mulf %74, %79 : vector<4x512xf32>
    %c0_50 = arith.constant 0 : index
    %c0_51 = arith.constant 0 : index
    %81 = vector.load %arg5[%c0_50, %c0_51] : memref<4x512xf32, #tpu.memory_space<vmem>>, vector<4x512xf32>
    tpu.vector_store %arg5[%c0_50, %c0_51], %80 {strides = array<i32>} : memref<4x512xf32, #tpu.memory_space<vmem>>, vector<4x512xf32>,
    return
  }
  func.func @transform_0(%arg0: i32) -> (i32, i32) {
    %c0_i32 = arith.constant 0 : i32
    %c0_i32_0 = arith.constant 0 : i32
    return %c0_i32, %arg0 : i32, i32
  }
  func.func @transform_1(%arg0: i32) -> (i32, i32, i32) {
    %c0_i32 = arith.constant 0 : i32
    %c0_i32_0 = arith.constant 0 : i32
    %c0_i32_1 = arith.constant 0 : i32
    %c0_i32_2 = arith.constant 0 : i32
    return %c0_i32, %c0_i32_0, %c0_i32_1 : i32, i32, i32
  }
  func.func @transform_2(%arg0: i32) -> (i32, i32) {
    %c0_i32 = arith.constant 0 : i32
    %c0_i32_0 = arith.constant 0 : i32
    %c0_i32_1 = arith.constant 0 : i32
    return %c0_i32, %c0_i32_0 : i32, i32
  }
  func.func @transform_3(%arg0: i32) -> (i32, i32) {
    %c0_i32 = arith.constant 0 : i32
    %c0_i32_0 = arith.constant 0 : i32
    %c0_i32_1 = arith.constant 0 : i32
    return %c0_i32, %c0_i32_0 : i32, i32
  }
  func.func @transform_4(%arg0: i32) -> (i32, i32) {
    %c0_i32 = arith.constant 0 : i32
    %c0_i32_0 = arith.constant 0 : i32
    return %c0_i32, %arg0 : i32, i32
  }
}

</mosaic_0001>

<llo_original>
// kernel: feedforward_forward.1
$region0: #{feedforward_forward.1}
  #allocation0 [shape = 'u32[]', space=smem, size = 0x4, offset = 0x4, fixed_abs, tag = 'smem constant byte address 0x4 - core index']
  #allocation1 [shape = 'u32[72,128]{1,0:T(1,128)}', space=vmem, size = 0x9000, scoped, tag = 'internal scratch']
  %s0 = inlined_call_operand.vmem [shape: f32[4,512], index: 0, kind: input, shape index: {}]
  %s1 = inlined_call_operand.vmem [shape: f32[9,4,4], index: 1, kind: input, shape index: {}]
  %s2 = inlined_call_operand.vmem [shape: f32[4,1], index: 2, kind: input, shape index: {}]
  %s3 = inlined_call_operand.vmem [shape: f32[9,512], index: 3, kind: input, shape index: {}]
  %s4 = inlined_call_operand.vmem [shape: f32[4,512], index: 4, kind: output, shape index: {}]
  %s5 = sld [smem:[#allocation0]]
  $region26: #{feedforward_forward.1} parent=0
    _
  %s7 = ssub.s32 1, %s5
  %s8 = scalar_select 0, %s7, %s5
  // Predicated region
  $region2: #{feedforward_forward.1} parent=0 // pred_check
    _
  $region3: #{feedforward_forward.1} parent=0 // pred_check_branch
    %10 = sbr.rel (0) target = $region5
  $region4: #{feedforward_forward.1} parent=0 // pred_region
    _
  $region5: #{feedforward_forward.1} parent=0 // pred_fallthru
    _
  // Predicated region
  $region6: #{feedforward_forward.1} parent=0 // pred_check
    _
  $region7: #{feedforward_forward.1} parent=0 // pred_check_branch
    %12 = sbr.rel (0) target = $region9
  $region8: #{feedforward_forward.1} parent=0 // pred_region
    _
  $region9: #{feedforward_forward.1} parent=0 // pred_fallthru
    _
  // Predicated region
  $region10: #{feedforward_forward.1} parent=0 // pred_check
    _
  $region11: #{feedforward_forward.1} parent=0 // pred_check_branch
    %14 = sbr.rel (0) target = $region13
  $region12: #{feedforward_forward.1} parent=0 // pred_region
    _
  $region13: #{feedforward_forward.1} parent=0 // pred_fallthru
    _
  // Predicated region
  $region14: #{feedforward_forward.1} parent=0 // pred_check
    _
  $region15: #{feedforward_forward.1} parent=0 // pred_check_branch
    %16 = sbr.rel (0) target = $region17
  $region16: #{feedforward_forward.1} parent=0 // pred_region
    _
  $region17: #{feedforward_forward.1} parent=0 // pred_fallthru
    _
  %v17 = vld [vmem:[%s0] sm:$0xff]
  %v18 = vld [vmem:[%s0 + $0x8] sm:$0xff]
  %21 = vst [vmem:[#allocation1] ss:$2 sm:$0xff] %v17
  %s22 = scalar_lea.vmem [#allocation1], 16
  %23 = vst [vmem:[%s22] ss:$2 sm:$0xff] %v18
  %v24 = vld.sshfl [vmem:[#allocation1] sm:$0xff pattern:$0x75316420]
  %v25 = vld.sshfl [vmem:[#allocation1 + $0x8] sm:$0xff pattern:$0x75316420]
  %v26 = vld.sshfl [vmem:[#allocation1 + $0x10] sm:$0xff pattern:$0x75316420]
  %v27 = vld.sshfl [vmem:[#allocation1 + $0x18] sm:$0xff pattern:$0x75316420]
  %32 = vrot.lane.b32.xlu0 %v24, 17
  %v33 = vpop.permute.xlu0 %32
  %34 = vrot.lane.b32.xlu0 %v25, 17
  %v35 = vpop.permute.xlu0 %34
  %36 = vrot.lane.b32.xlu0 %v26, 17
  %v37 = vpop.permute.xlu0 %36
  %38 = vrot.lane.b32.xlu0 %v27, 17
  %v39 = vpop.permute.xlu0 %38
  %v40 = vlaneseq
  %v41 = vand.u32 %v40, 127
  %vm42 = vcmp.lt.s32.totalorder %v41, 17
  %v43 = vsel %vm42, %v37, %v39
  %v44 = vsel %vm42, %v35, %v37
  %v45 = vsel %vm42, %v33, %v35
  %v46 = vsel %vm42, %v39, %v33
  %v47 = vld [vmem:[%s3] ss:$8 sm:$0xf]
  %v49 = vperm.slane %v47, 0
  %v50 = vperm.slane %v47, 1
  %v51 = vperm.slane %v47, 2
  %v52 = vperm.slane %v47, 3
  %v57 = vmul.f32 %v46, %v49
  %v58 = vmul.f32 %v45, %v50
  %v59 = vmul.f32 %v44, %v51
  %v60 = vmul.f32 %v43, %v52
  %v61 = vld [vmem:[%s1] sm:$0xf]
  %62 = vst [vmem:[#allocation1] ss:$2 sm:$0xff] %v17
  %s63 = scalar_lea.vmem [#allocation1], 16
  %64 = vst [vmem:[%s63] ss:$2 sm:$0xff] %v18
  %v65 = vld.sshfl [vmem:[#allocation1] sm:$0xff pattern:$0x75316420]
  %v66 = vld.sshfl [vmem:[#allocation1 + $0x8] sm:$0xff pattern:$0x75316420]
  %v67 = vld.sshfl [vmem:[#allocation1 + $0x10] sm:$0xff pattern:$0x75316420]
  %v68 = vld.sshfl [vmem:[#allocation1 + $0x18] sm:$0xff pattern:$0x75316420]
  %73 = vrot.lane.b32.xlu0 %v65, 16
  %v74 = vpop.permute.xlu0 %73
  %75 = vrot.lane.b32.xlu0 %v66, 16
  %v76 = vpop.permute.xlu0 %75
  %77 = vrot.lane.b32.xlu0 %v67, 16
  %v78 = vpop.permute.xlu0 %77
  %79 = vrot.lane.b32.xlu0 %v68, 16
  %v80 = vpop.permute.xlu0 %79
  %vm81 = vcmp.lt.s32.totalorder %v41, 16
  %v82 = vsel %vm81, %v78, %v80
  %v83 = vsel %vm81, %v76, %v78
  %v84 = vsel %vm81, %v74, %v76
  %v85 = vsel %vm81, %v80, %v74
  %s86 = scalar_lea.vmem %s3, 1
  %v87 = vld [vmem:[%s86] ss:$8 sm:$0xf]
  %v89 = vperm.slane %v87, 0
  %v90 = vperm.slane %v87, 1
  %v91 = vperm.slane %v87, 2
  %v92 = vperm.slane %v87, 3
  %v97 = vmul.f32 %v85, %v89
  %v98 = vmul.f32 %v84, %v90
  %v99 = vmul.f32 %v83, %v91
  %v100 = vmul.f32 %v82, %v92
  %s101 = scalar_lea.vmem %s1, 4
  %v102 = vld [vmem:[%s101] sm:$0xf]
  %vm103 = vcmask 31744
  %v105 = vsel %vm103, %v102, 0
  %vm107 = vcmask 1043456
  %v109 = vsel %vm107, %v97, 0
  %v112 = vsel %vm107, %v98, 0
  %v115 = vsel %vm107, %v99, 0
  %v118 = vsel %vm107, %v100, 0
  %120 = vmatpush.msra.mxu0 0.0
  %121 = vmatpush.msra.mxu0 0.0
  %122 = vmatpush.msra.mxu0 0.0
  %123 = vmatpush.msra.mxu0 0.0
  %124 = vmatpush.msra.mxu0 0.0
  %125 = vmatpush.msra.mxu0 0.0
  %126 = vmatpush.msra.mxu0 0.0
  %127 = vmatpush.msra.mxu0 0.0
  %128 = vmatpush.msra.mxu0 0.0
  %129 = vmatpush.msra.mxu0 0.0
  %130 = vmatpush.msra.mxu0 0.0
  %131 = vmatpush.msra.mxu0 0.0
  %132 = vmatpush.msra.mxu0 0.0
  %133 = vmatpush.msra.mxu0 0.0
  %134 = vmatpush.msra.mxu0 0.0
  %135 = vmatpush.msra.mxu0 %v109
  %136 = vmatmul.f32.gmra.mxu0 %v105
  %v137 = vpop.f32.mrf.mxu0
  %v138 = vadd.f32 0.0, %v137
  %139 = vdwg.mxu0
  %140 = vmatpush.msra.mxu0 0.0
  %141 = vmatpush.msra.mxu0 0.0
  %142 = vmatpush.msra.mxu0 0.0
  %143 = vmatpush.msra.mxu0 0.0
  %144 = vmatpush.msra.mxu0 0.0
  %145 = vmatpush.msra.mxu0 0.0
  %146 = vmatpush.msra.mxu0 0.0
  %147 = vmatpush.msra.mxu0 0.0
  %148 = vmatpush.msra.mxu0 0.0
  %149 = vmatpush.msra.mxu0 0.0
  %150 = vmatpush.msra.mxu0 0.0
  %151 = vmatpush.msra.mxu0 0.0
  %152 = vmatpush.msra.mxu0 0.0
  %153 = vmatpush.msra.mxu0 0.0
  %154 = vmatpush.msra.mxu0 0.0
  %155 = vmatpush.msra.mxu0 %v112
  %156 = vmatmul.f32.gmra.mxu0 %v105
  %v157 = vpop.f32.mrf.mxu0
  %v158 = vadd.f32 0.0, %v157
  %159 = vdwg.mxu0
  %160 = vmatpush.msra.mxu0 0.0
  %161 = vmatpush.msra.mxu0 0.0
  %162 = vmatpush.msra.mxu0 0.0
  %163 = vmatpush.msra.mxu0 0.0
  %164 = vmatpush.msra.mxu0 0.0
  %165 = vmatpush.msra.mxu0 0.0
  %166 = vmatpush.msra.mxu0 0.0
  %167 = vmatpush.msra.mxu0 0.0
  %168 = vmatpush.msra.mxu0 0.0
  %169 = vmatpush.msra.mxu0 0.0
  %170 = vmatpush.msra.mxu0 0.0
  %171 = vmatpush.msra.mxu0 0.0
  %172 = vmatpush.msra.mxu0 0.0
  %173 = vmatpush.msra.mxu0 0.0
  %174 = vmatpush.msra.mxu0 0.0
  %175 = vmatpush.msra.mxu0 %v115
  %176 = vmatmul.f32.gmra.mxu0 %v105
  %v177 = vpop.f32.mrf.mxu0
  %v178 = vadd.f32 0.0, %v177
  %179 = vdwg.mxu0
  %180 = vmatpush.msra.mxu0 0.0
  %181 = vmatpush.msra.mxu0 0.0
  %182 = vmatpush.msra.mxu0 0.0
  %183 = vmatpush.msra.mxu0 0.0
  %184 = vmatpush.msra.mxu0 0.0
  %185 = vmatpush.msra.mxu0 0.0
  %186 = vmatpush.msra.mxu0 0.0
  %187 = vmatpush.msra.mxu0 0.0
  %188 = vmatpush.msra.mxu0 0.0
  %189 = vmatpush.msra.mxu0 0.0
  %190 = vmatpush.msra.mxu0 0.0
  %191 = vmatpush.msra.mxu0 0.0
  %192 = vmatpush.msra.mxu0 0.0
  %193 = vmatpush.msra.mxu0 0.0
  %194 = vmatpush.msra.mxu0 0.0
  %195 = vmatpush.msra.mxu0 %v118
  %196 = vmatmul.f32.gmra.mxu0 %v105
  %v197 = vpop.f32.mrf.mxu0
  %v198 = vadd.f32 0.0, %v197
  %199 = vdwg.mxu0
  %v201 = vsel %vm103, %v61, 0
  %v204 = vsel %vm107, %v57, 0
  %v207 = vsel %vm107, %v58, 0
  %v210 = vsel %vm107, %v59, 0
  %v213 = vsel %vm107, %v60, 0
  %215 = vmatpush.msra.mxu0 0.0
  %216 = vmatpush.msra.mxu0 0.0
  %217 = vmatpush.msra.mxu0 0.0
  %218 = vmatpush.msra.mxu0 0.0
  %219 = vmatpush.msra.mxu0 0.0
  %220 = vmatpush.msra.mxu0 0.0
  %221 = vmatpush.msra.mxu0 0.0
  %222 = vmatpush.msra.mxu0 0.0
  %223 = vmatpush.msra.mxu0 0.0
  %224 = vmatpush.msra.mxu0 0.0
  %225 = vmatpush.msra.mxu0 0.0
  %226 = vmatpush.msra.mxu0 0.0
  %227 = vmatpush.msra.mxu0 0.0
  %228 = vmatpush.msra.mxu0 0.0
  %229 = vmatpush.msra.mxu0 0.0
  %230 = vmatpush.msra.mxu0 %v204
  %231 = vmatmul.f32.gmra.mxu0 %v201
  %v232 = vpop.f32.mrf.mxu0
  %v233 = vadd.f32 %v138, %v232
  %234 = vdwg.mxu0
  %235 = vmatpush.msra.mxu0 0.0
  %236 = vmatpush.msra.mxu0 0.0
  %237 = vmatpush.msra.mxu0 0.0
  %238 = vmatpush.msra.mxu0 0.0
  %239 = vmatpush.msra.mxu0 0.0
  %240 = vmatpush.msra.mxu0 0.0
  %241 = vmatpush.msra.mxu0 0.0
  %242 = vmatpush.msra.mxu0 0.0
  %243 = vmatpush.msra.mxu0 0.0
  %244 = vmatpush.msra.mxu0 0.0
  %245 = vmatpush.msra.mxu0 0.0
  %246 = vmatpush.msra.mxu0 0.0
  %247 = vmatpush.msra.mxu0 0.0
  %248 = vmatpush.msra.mxu0 0.0
  %249 = vmatpush.msra.mxu0 0.0
  %250 = vmatpush.msra.mxu0 %v207
  %251 = vmatmul.f32.gmra.mxu0 %v201
  %v252 = vpop.f32.mrf.mxu0
  %v253 = vadd.f32 %v158, %v252
  %254 = vdwg.mxu0
  %255 = vmatpush.msra.mxu0 0.0
  %256 = vmatpush.msra.mxu0 0.0
  %257 = vmatpush.msra.mxu0 0.0
  %258 = vmatpush.msra.mxu0 0.0
  %259 = vmatpush.msra.mxu0 0.0
  %260 = vmatpush.msra.mxu0 0.0
  %261 = vmatpush.msra.mxu0 0.0
  %262 = vmatpush.msra.mxu0 0.0
  %263 = vmatpush.msra.mxu0 0.0
  %264 = vmatpush.msra.mxu0 0.0
  %265 = vmatpush.msra.mxu0 0.0
  %266 = vmatpush.msra.mxu0 0.0
  %267 = vmatpush.msra.mxu0 0.0
  %268 = vmatpush.msra.mxu0 0.0
  %269 = vmatpush.msra.mxu0 0.0
  %270 = vmatpush.msra.mxu0 %v210
  %271 = vmatmul.f32.gmra.mxu0 %v201
  %v272 = vpop.f32.mrf.mxu0
  %v273 = vadd.f32 %v178, %v272
  %274 = vdwg.mxu0
  %275 = vmatpush.msra.mxu0 0.0
  %276 = vmatpush.msra.mxu0 0.0
  %277 = vmatpush.msra.mxu0 0.0
  %278 = vmatpush.msra.mxu0 0.0
  %279 = vmatpush.msra.mxu0 0.0
  %280 = vmatpush.msra.mxu0 0.0
  %281 = vmatpush.msra.mxu0 0.0
  %282 = vmatpush.msra.mxu0 0.0
  %283 = vmatpush.msra.mxu0 0.0
  %284 = vmatpush.msra.mxu0 0.0
  %285 = vmatpush.msra.mxu0 0.0
  %286 = vmatpush.msra.mxu0 0.0
  %287 = vmatpush.msra.mxu0 0.0
  %288 = vmatpush.msra.mxu0 0.0
  %289 = vmatpush.msra.mxu0 0.0
  %290 = vmatpush.msra.mxu0 %v213
  %291 = vmatmul.f32.gmra.mxu0 %v201
  %v292 = vpop.f32.mrf.mxu0
  %v293 = vadd.f32 %v198, %v292
  %294 = vdwg.mxu0
  %295 = vst [vmem:[#allocation1] ss:$2 sm:$0xff] %v17
  %s296 = scalar_lea.vmem [#allocation1], 16
  %297 = vst [vmem:[%s296] ss:$2 sm:$0xff] %v18
  %v298 = vld.sshfl [vmem:[#allocation1] sm:$0xff pattern:$0x75316420]
  %v299 = vld.sshfl [vmem:[#allocation1 + $0x8] sm:$0xff pattern:$0x75316420]
  %v300 = vld.sshfl [vmem:[#allocation1 + $0x10] sm:$0xff pattern:$0x75316420]
  %v301 = vld.sshfl [vmem:[#allocation1 + $0x18] sm:$0xff pattern:$0x75316420]
  %306 = vrot.lane.b32.xlu0 %v298, 15
  %v307 = vpop.permute.xlu0 %306
  %308 = vrot.lane.b32.xlu0 %v299, 15
  %v309 = vpop.permute.xlu0 %308
  %310 = vrot.lane.b32.xlu0 %v300, 15
  %v311 = vpop.permute.xlu0 %310
  %312 = vrot.lane.b32.xlu0 %v301, 15
  %v313 = vpop.permute.xlu0 %312
  %vm314 = vcmp.lt.s32.totalorder %v41, 15
  %v315 = vsel %vm314, %v311, %v313
  %v316 = vsel %vm314, %v309, %v311
  %v317 = vsel %vm314, %v307, %v309
  %v318 = vsel %vm314, %v313, %v307
  %s319 = scalar_lea.vmem %s3, 2
  %v320 = vld [vmem:[%s319] ss:$8 sm:$0xf]
  %v322 = vperm.slane %v320, 0
  %v323 = vperm.slane %v320, 1
  %v324 = vperm.slane %v320, 2
  %v325 = vperm.slane %v320, 3
  %v330 = vmul.f32 %v318, %v322
  %v331 = vmul.f32 %v317, %v323
  %v332 = vmul.f32 %v316, %v324
  %v333 = vmul.f32 %v315, %v325
  %s334 = scalar_lea.vmem %s1, 8
  %v335 = vld [vmem:[%s334] sm:$0xf]
  %v337 = vsel %vm103, %v335, 0
  %v340 = vsel %vm107, %v330, 0
  %v343 = vsel %vm107, %v331, 0
  %v346 = vsel %vm107, %v332, 0
  %v349 = vsel %vm107, %v333, 0
  %351 = vmatpush.msra.mxu0 0.0
  %352 = vmatpush.msra.mxu0 0.0
  %353 = vmatpush.msra.mxu0 0.0
  %354 = vmatpush.msra.mxu0 0.0
  %355 = vmatpush.msra.mxu0 0.0
  %356 = vmatpush.msra.mxu0 0.0
  %357 = vmatpush.msra.mxu0 0.0
  %358 = vmatpush.msra.mxu0 0.0
  %359 = vmatpush.msra.mxu0 0.0
  %360 = vmatpush.msra.mxu0 0.0
  %361 = vmatpush.msra.mxu0 0.0
  %362 = vmatpush.msra.mxu0 0.0
  %363 = vmatpush.msra.mxu0 0.0
  %364 = vmatpush.msra.mxu0 0.0
  %365 = vmatpush.msra.mxu0 0.0
  %366 = vmatpush.msra.mxu0 %v340
  %367 = vmatmul.f32.gmra.mxu0 %v337
  %v368 = vpop.f32.mrf.mxu0
  %v369 = vadd.f32 0.0, %v368
  %370 = vdwg.mxu0
  %371 = vmatpush.msra.mxu0 0.0
  %372 = vmatpush.msra.mxu0 0.0
  %373 = vmatpush.msra.mxu0 0.0
  %374 = vmatpush.msra.mxu0 0.0
  %375 = vmatpush.msra.mxu0 0.0
  %376 = vmatpush.msra.mxu0 0.0
  %377 = vmatpush.msra.mxu0 0.0
  %378 = vmatpush.msra.mxu0 0.0
  %379 = vmatpush.msra.mxu0 0.0
  %380 = vmatpush.msra.mxu0 0.0
  %381 = vmatpush.msra.mxu0 0.0
  %382 = vmatpush.msra.mxu0 0.0
  %383 = vmatpush.msra.mxu0 0.0
  %384 = vmatpush.msra.mxu0 0.0
  %385 = vmatpush.msra.mxu0 0.0
  %386 = vmatpush.msra.mxu0 %v343
  %387 = vmatmul.f32.gmra.mxu0 %v337
  %v388 = vpop.f32.mrf.mxu0
  %v389 = vadd.f32 0.0, %v388
  %390 = vdwg.mxu0
  %391 = vmatpush.msra.mxu0 0.0
  %392 = vmatpush.msra.mxu0 0.0
  %393 = vmatpush.msra.mxu0 0.0
  %394 = vmatpush.msra.mxu0 0.0
  %395 = vmatpush.msra.mxu0 0.0
  %396 = vmatpush.msra.mxu0 0.0
  %397 = vmatpush.msra.mxu0 0.0
  %398 = vmatpush.msra.mxu0 0.0
  %399 = vmatpush.msra.mxu0 0.0
  %400 = vmatpush.msra.mxu0 0.0
  %401 = vmatpush.msra.mxu0 0.0
  %402 = vmatpush.msra.mxu0 0.0
  %403 = vmatpush.msra.mxu0 0.0
  %404 = vmatpush.msra.mxu0 0.0
  %405 = vmatpush.msra.mxu0 0.0
  %406 = vmatpush.msra.mxu0 %v346
  %407 = vmatmul.f32.gmra.mxu0 %v337
  %v408 = vpop.f32.mrf.mxu0
  %v409 = vadd.f32 0.0, %v408
  %410 = vdwg.mxu0
  %411 = vmatpush.msra.mxu0 0.0
  %412 = vmatpush.msra.mxu0 0.0
  %413 = vmatpush.msra.mxu0 0.0
  %414 = vmatpush.msra.mxu0 0.0
  %415 = vmatpush.msra.mxu0 0.0
  %416 = vmatpush.msra.mxu0 0.0
  %417 = vmatpush.msra.mxu0 0.0
  %418 = vmatpush.msra.mxu0 0.0
  %419 = vmatpush.msra.mxu0 0.0
  %420 = vmatpush.msra.mxu0 0.0
  %421 = vmatpush.msra.mxu0 0.0
  %422 = vmatpush.msra.mxu0 0.0
  %423 = vmatpush.msra.mxu0 0.0
  %424 = vmatpush.msra.mxu0 0.0
  %425 = vmatpush.msra.mxu0 0.0
  %426 = vmatpush.msra.mxu0 %v349
  %427 = vmatmul.f32.gmra.mxu0 %v337
  %v428 = vpop.f32.mrf.mxu0
  %v429 = vadd.f32 0.0, %v428
  %430 = vdwg.mxu0
  %v431 = vadd.f32 %v233, %v369
  %v432 = vadd.f32 %v253, %v389
  %v433 = vadd.f32 %v273, %v409
  %v434 = vadd.f32 %v293, %v429
  %435 = vst [vmem:[#allocation1] ss:$2 sm:$0xff] %v17
  %s436 = scalar_lea.vmem [#allocation1], 16
  %437 = vst [vmem:[%s436] ss:$2 sm:$0xff] %v18
  %v438 = vld.sshfl [vmem:[#allocation1] sm:$0xff pattern:$0x75316420]
  %v439 = vld.sshfl [vmem:[#allocation1 + $0x8] sm:$0xff pattern:$0x75316420]
  %v440 = vld.sshfl [vmem:[#allocation1 + $0x10] sm:$0xff pattern:$0x75316420]
  %v441 = vld.sshfl [vmem:[#allocation1 + $0x18] sm:$0xff pattern:$0x75316420]
  %446 = vrot.lane.b32.xlu0 %v438, 1
  %v447 = vpop.permute.xlu0 %446
  %448 = vrot.lane.b32.xlu0 %v439, 1
  %v449 = vpop.permute.xlu0 %448
  %450 = vrot.lane.b32.xlu0 %v440, 1
  %v451 = vpop.permute.xlu0 %450
  %452 = vrot.lane.b32.xlu0 %v441, 1
  %v453 = vpop.permute.xlu0 %452
  %vm454 = vcmp.lt.s32.totalorder %v41, 1
  %v455 = vsel %vm454, %v451, %v453
  %v456 = vsel %vm454, %v449, %v451
  %v457 = vsel %vm454, %v447, %v449
  %v458 = vsel %vm454, %v453, %v447
  %s459 = scalar_lea.vmem %s3, 3
  %v460 = vld [vmem:[%s459] ss:$8 sm:$0xf]
  %v462 = vperm.slane %v460, 0
  %v463 = vperm.slane %v460, 1
  %v464 = vperm.slane %v460, 2
  %v465 = vperm.slane %v460, 3
  %v470 = vmul.f32 %v458, %v462
  %v471 = vmul.f32 %v457, %v463
  %v472 = vmul.f32 %v456, %v464
  %v473 = vmul.f32 %v455, %v465
  %s474 = scalar_lea.vmem %s1, 12
  %v475 = vld [vmem:[%s474] sm:$0xf]
  %v477 = vsel %vm103, %v475, 0
  %v480 = vsel %vm107, %v470, 0
  %v483 = vsel %vm107, %v471, 0
  %v486 = vsel %vm107, %v472, 0
  %v489 = vsel %vm107, %v473, 0
  %491 = vmatpush.msra.mxu0 0.0
  %492 = vmatpush.msra.mxu0 0.0
  %493 = vmatpush.msra.mxu0 0.0
  %494 = vmatpush.msra.mxu0 0.0
  %495 = vmatpush.msra.mxu0 0.0
  %496 = vmatpush.msra.mxu0 0.0
  %497 = vmatpush.msra.mxu0 0.0
  %498 = vmatpush.msra.mxu0 0.0
  %499 = vmatpush.msra.mxu0 0.0
  %500 = vmatpush.msra.mxu0 0.0
  %501 = vmatpush.msra.mxu0 0.0
  %502 = vmatpush.msra.mxu0 0.0
  %503 = vmatpush.msra.mxu0 0.0
  %504 = vmatpush.msra.mxu0 0.0
  %505 = vmatpush.msra.mxu0 0.0
  %506 = vmatpush.msra.mxu0 %v480
  %507 = vmatmul.f32.gmra.mxu0 %v477
  %v508 = vpop.f32.mrf.mxu0
  %v509 = vadd.f32 0.0, %v508
  %510 = vdwg.mxu0
  %511 = vmatpush.msra.mxu0 0.0
  %512 = vmatpush.msra.mxu0 0.0
  %513 = vmatpush.msra.mxu0 0.0
  %514 = vmatpush.msra.mxu0 0.0
  %515 = vmatpush.msra.mxu0 0.0
  %516 = vmatpush.msra.mxu0 0.0
  %517 = vmatpush.msra.mxu0 0.0
  %518 = vmatpush.msra.mxu0 0.0
  %519 = vmatpush.msra.mxu0 0.0
  %520 = vmatpush.msra.mxu0 0.0
  %521 = vmatpush.msra.mxu0 0.0
  %522 = vmatpush.msra.mxu0 0.0
  %523 = vmatpush.msra.mxu0 0.0
  %524 = vmatpush.msra.mxu0 0.0
  %525 = vmatpush.msra.mxu0 0.0
  %526 = vmatpush.msra.mxu0 %v483
  %527 = vmatmul.f32.gmra.mxu0 %v477
  %v528 = vpop.f32.mrf.mxu0
  %v529 = vadd.f32 0.0, %v528
  %530 = vdwg.mxu0
  %531 = vmatpush.msra.mxu0 0.0
  %532 = vmatpush.msra.mxu0 0.0
  %533 = vmatpush.msra.mxu0 0.0
  %534 = vmatpush.msra.mxu0 0.0
  %535 = vmatpush.msra.mxu0 0.0
  %536 = vmatpush.msra.mxu0 0.0
  %537 = vmatpush.msra.mxu0 0.0
  %538 = vmatpush.msra.mxu0 0.0
  %539 = vmatpush.msra.mxu0 0.0
  %540 = vmatpush.msra.mxu0 0.0
  %541 = vmatpush.msra.mxu0 0.0
  %542 = vmatpush.msra.mxu0 0.0
  %543 = vmatpush.msra.mxu0 0.0
  %544 = vmatpush.msra.mxu0 0.0
  %545 = vmatpush.msra.mxu0 0.0
  %546 = vmatpush.msra.mxu0 %v486
  %547 = vmatmul.f32.gmra.mxu0 %v477
  %v548 = vpop.f32.mrf.mxu0
  %v549 = vadd.f32 0.0, %v548
  %550 = vdwg.mxu0
  %551 = vmatpush.msra.mxu0 0.0
  %552 = vmatpush.msra.mxu0 0.0
  %553 = vmatpush.msra.mxu0 0.0
  %554 = vmatpush.msra.mxu0 0.0
  %555 = vmatpush.msra.mxu0 0.0
  %556 = vmatpush.msra.mxu0 0.0
  %557 = vmatpush.msra.mxu0 0.0
  %558 = vmatpush.msra.mxu0 0.0
  %559 = vmatpush.msra.mxu0 0.0
  %560 = vmatpush.msra.mxu0 0.0
  %561 = vmatpush.msra.mxu0 0.0
  %562 = vmatpush.msra.mxu0 0.0
  %563 = vmatpush.msra.mxu0 0.0
  %564 = vmatpush.msra.mxu0 0.0
  %565 = vmatpush.msra.mxu0 0.0
  %566 = vmatpush.msra.mxu0 %v489
  %567 = vmatmul.f32.gmra.mxu0 %v477
  %v568 = vpop.f32.mrf.mxu0
  %v569 = vadd.f32 0.0, %v568
  %570 = vdwg.mxu0
  %v571 = vadd.f32 %v431, %v509
  %v572 = vadd.f32 %v432, %v529
  %v573 = vadd.f32 %v433, %v549
  %v574 = vadd.f32 %v434, %v569
  %s575 = scalar_lea.vmem %s1, 16
  %v576 = vld [vmem:[%s575] sm:$0xf]
  %577 = vst [vmem:[#allocation1] ss:$2 sm:$0xff] %v17
  %s578 = scalar_lea.vmem [#allocation1], 16
  %579 = vst [vmem:[%s578] ss:$2 sm:$0xff] %v18
  %v580 = vld.sshfl [vmem:[#allocation1] sm:$0xff pattern:$0x75316420]
  %v581 = vld.sshfl [vmem:[#allocation1 + $0x8] sm:$0xff pattern:$0x75316420]
  %v582 = vld.sshfl [vmem:[#allocation1 + $0x10] sm:$0xff pattern:$0x75316420]
  %v583 = vld.sshfl [vmem:[#allocation1 + $0x18] sm:$0xff pattern:$0x75316420]
  %v585 = vsel %vm103, %v576, 0
  %v587 = vsel %vm107, %v580, 0
  %v589 = vsel %vm107, %v581, 0
  %v591 = vsel %vm107, %v582, 0
  %v593 = vsel %vm107, %v583, 0
  %595 = vmatpush.msra.mxu0 0.0
  %596 = vmatpush.msra.mxu0 0.0
  %597 = vmatpush.msra.mxu0 0.0
  %598 = vmatpush.msra.mxu0 0.0
  %599 = vmatpush.msra.mxu0 0.0
  %600 = vmatpush.msra.mxu0 0.0
  %601 = vmatpush.msra.mxu0 0.0
  %602 = vmatpush.msra.mxu0 0.0
  %603 = vmatpush.msra.mxu0 0.0
  %604 = vmatpush.msra.mxu0 0.0
  %605 = vmatpush.msra.mxu0 0.0
  %606 = vmatpush.msra.mxu0 0.0
  %607 = vmatpush.msra.mxu0 0.0
  %608 = vmatpush.msra.mxu0 0.0
  %609 = vmatpush.msra.mxu0 0.0
  %610 = vmatpush.msra.mxu0 %v587
  %611 = vmatmul.f32.gmra.mxu0 %v585
  %v612 = vpop.f32.mrf.mxu0
  %v613 = vadd.f32 0.0, %v612
  %614 = vdwg.mxu0
  %615 = vmatpush.msra.mxu0 0.0
  %616 = vmatpush.msra.mxu0 0.0
  %617 = vmatpush.msra.mxu0 0.0
  %618 = vmatpush.msra.mxu0 0.0
  %619 = vmatpush.msra.mxu0 0.0
  %620 = vmatpush.msra.mxu0 0.0
  %621 = vmatpush.msra.mxu0 0.0
  %622 = vmatpush.msra.mxu0 0.0
  %623 = vmatpush.msra.mxu0 0.0
  %624 = vmatpush.msra.mxu0 0.0
  %625 = vmatpush.msra.mxu0 0.0
  %626 = vmatpush.msra.mxu0 0.0
  %627 = vmatpush.msra.mxu0 0.0
  %628 = vmatpush.msra.mxu0 0.0
  %629 = vmatpush.msra.mxu0 0.0
  %630 = vmatpush.msra.mxu0 %v589
  %631 = vmatmul.f32.gmra.mxu0 %v585
  %v632 = vpop.f32.mrf.mxu0
  %v633 = vadd.f32 0.0, %v632
  %634 = vdwg.mxu0
  %635 = vmatpush.msra.mxu0 0.0
  %636 = vmatpush.msra.mxu0 0.0
  %637 = vmatpush.msra.mxu0 0.0
  %638 = vmatpush.msra.mxu0 0.0
  %639 = vmatpush.msra.mxu0 0.0
  %640 = vmatpush.msra.mxu0 0.0
  %641 = vmatpush.msra.mxu0 0.0
  %642 = vmatpush.msra.mxu0 0.0
  %643 = vmatpush.msra.mxu0 0.0
  %644 = vmatpush.msra.mxu0 0.0
  %645 = vmatpush.msra.mxu0 0.0
  %646 = vmatpush.msra.mxu0 0.0
  %647 = vmatpush.msra.mxu0 0.0
  %648 = vmatpush.msra.mxu0 0.0
  %649 = vmatpush.msra.mxu0 0.0
  %650 = vmatpush.msra.mxu0 %v591
  %651 = vmatmul.f32.gmra.mxu0 %v585
  %v652 = vpop.f32.mrf.mxu0
  %v653 = vadd.f32 0.0, %v652
  %654 = vdwg.mxu0
  %655 = vmatpush.msra.mxu0 0.0
  %656 = vmatpush.msra.mxu0 0.0
  %657 = vmatpush.msra.mxu0 0.0
  %658 = vmatpush.msra.mxu0 0.0
  %659 = vmatpush.msra.mxu0 0.0
  %660 = vmatpush.msra.mxu0 0.0
  %661 = vmatpush.msra.mxu0 0.0
  %662 = vmatpush.msra.mxu0 0.0
  %663 = vmatpush.msra.mxu0 0.0
  %664 = vmatpush.msra.mxu0 0.0
  %665 = vmatpush.msra.mxu0 0.0
  %666 = vmatpush.msra.mxu0 0.0
  %667 = vmatpush.msra.mxu0 0.0
  %668 = vmatpush.msra.mxu0 0.0
  %669 = vmatpush.msra.mxu0 0.0
  %670 = vmatpush.msra.mxu0 %v593
  %671 = vmatmul.f32.gmra.mxu0 %v585
  %v672 = vpop.f32.mrf.mxu0
  %v673 = vadd.f32 0.0, %v672
  %674 = vdwg.mxu0
  %v675 = vadd.f32 %v571, %v613
  %v676 = vadd.f32 %v572, %v633
  %v677 = vadd.f32 %v573, %v653
  %v678 = vadd.f32 %v574, %v673
  %679 = vst [vmem:[#allocation1] ss:$2 sm:$0xff] %v17
  %s680 = scalar_lea.vmem [#allocation1], 16
  %681 = vst [vmem:[%s680] ss:$2 sm:$0xff] %v18
  %v682 = vld.sshfl [vmem:[#allocation1] sm:$0xff pattern:$0x75316420]
  %v683 = vld.sshfl [vmem:[#allocation1 + $0x8] sm:$0xff pattern:$0x75316420]
  %v684 = vld.sshfl [vmem:[#allocation1 + $0x10] sm:$0xff pattern:$0x75316420]
  %v685 = vld.sshfl [vmem:[#allocation1 + $0x18] sm:$0xff pattern:$0x75316420]
  %690 = vrot.lane.b32.xlu0 %v682, 127
  %v691 = vpop.permute.xlu0 %690
  %692 = vrot.lane.b32.xlu0 %v683, 127
  %v693 = vpop.permute.xlu0 %692
  %694 = vrot.lane.b32.xlu0 %v684, 127
  %v695 = vpop.permute.xlu0 %694
  %696 = vrot.lane.b32.xlu0 %v685, 127
  %v697 = vpop.permute.xlu0 %696
  %vm698 = vcmp.lt.s32.totalorder %v41, 127
  %v699 = vsel %vm698, %v695, %v697
  %v700 = vsel %vm698, %v693, %v695
  %v701 = vsel %vm698, %v691, %v693
  %v702 = vsel %vm698, %v697, %v691
  %s703 = scalar_lea.vmem %s3, 5
  %v704 = vld [vmem:[%s703] ss:$8 sm:$0xf]
  %v706 = vperm.slane %v704, 0
  %v707 = vperm.slane %v704, 1
  %v708 = vperm.slane %v704, 2
  %v709 = vperm.slane %v704, 3
  %v714 = vmul.f32 %v701, %v706
  %v715 = vmul.f32 %v700, %v707
  %v716 = vmul.f32 %v699, %v708
  %v717 = vmul.f32 %v702, %v709
  %s718 = scalar_lea.vmem %s1, 20
  %v719 = vld [vmem:[%s718] sm:$0xf]
  %v721 = vsel %vm103, %v719, 0
  %v724 = vsel %vm107, %v714, 0
  %v727 = vsel %vm107, %v715, 0
  %v730 = vsel %vm107, %v716, 0
  %v733 = vsel %vm107, %v717, 0
  %735 = vmatpush.msra.mxu0 0.0
  %736 = vmatpush.msra.mxu0 0.0
  %737 = vmatpush.msra.mxu0 0.0
  %738 = vmatpush.msra.mxu0 0.0
  %739 = vmatpush.msra.mxu0 0.0
  %740 = vmatpush.msra.mxu0 0.0
  %741 = vmatpush.msra.mxu0 0.0
  %742 = vmatpush.msra.mxu0 0.0
  %743 = vmatpush.msra.mxu0 0.0
  %744 = vmatpush.msra.mxu0 0.0
  %745 = vmatpush.msra.mxu0 0.0
  %746 = vmatpush.msra.mxu0 0.0
  %747 = vmatpush.msra.mxu0 0.0
  %748 = vmatpush.msra.mxu0 0.0
  %749 = vmatpush.msra.mxu0 0.0
  %750 = vmatpush.msra.mxu0 %v724
  %751 = vmatmul.f32.gmra.mxu0 %v721
  %v752 = vpop.f32.mrf.mxu0
  %v753 = vadd.f32 0.0, %v752
  %754 = vdwg.mxu0
  %755 = vmatpush.msra.mxu0 0.0
  %756 = vmatpush.msra.mxu0 0.0
  %757 = vmatpush.msra.mxu0 0.0
  %758 = vmatpush.msra.mxu0 0.0
  %759 = vmatpush.msra.mxu0 0.0
  %760 = vmatpush.msra.mxu0 0.0
  %761 = vmatpush.msra.mxu0 0.0
  %762 = vmatpush.msra.mxu0 0.0
  %763 = vmatpush.msra.mxu0 0.0
  %764 = vmatpush.msra.mxu0 0.0
  %765 = vmatpush.msra.mxu0 0.0
  %766 = vmatpush.msra.mxu0 0.0
  %767 = vmatpush.msra.mxu0 0.0
  %768 = vmatpush.msra.mxu0 0.0
  %769 = vmatpush.msra.mxu0 0.0
  %770 = vmatpush.msra.mxu0 %v727
  %771 = vmatmul.f32.gmra.mxu0 %v721
  %v772 = vpop.f32.mrf.mxu0
  %v773 = vadd.f32 0.0, %v772
  %774 = vdwg.mxu0
  %775 = vmatpush.msra.mxu0 0.0
  %776 = vmatpush.msra.mxu0 0.0
  %777 = vmatpush.msra.mxu0 0.0
  %778 = vmatpush.msra.mxu0 0.0
  %779 = vmatpush.msra.mxu0 0.0
  %780 = vmatpush.msra.mxu0 0.0
  %781 = vmatpush.msra.mxu0 0.0
  %782 = vmatpush.msra.mxu0 0.0
  %783 = vmatpush.msra.mxu0 0.0
  %784 = vmatpush.msra.mxu0 0.0
  %785 = vmatpush.msra.mxu0 0.0
  %786 = vmatpush.msra.mxu0 0.0
  %787 = vmatpush.msra.mxu0 0.0
  %788 = vmatpush.msra.mxu0 0.0
  %789 = vmatpush.msra.mxu0 0.0
  %790 = vmatpush.msra.mxu0 %v730
  %791 = vmatmul.f32.gmra.mxu0 %v721
  %v792 = vpop.f32.mrf.mxu0
  %v793 = vadd.f32 0.0, %v792
  %794 = vdwg.mxu0
  %795 = vmatpush.msra.mxu0 0.0
  %796 = vmatpush.msra.mxu0 0.0
  %797 = vmatpush.msra.mxu0 0.0
  %798 = vmatpush.msra.mxu0 0.0
  %799 = vmatpush.msra.mxu0 0.0
  %800 = vmatpush.msra.mxu0 0.0
  %801 = vmatpush.msra.mxu0 0.0
  %802 = vmatpush.msra.mxu0 0.0
  %803 = vmatpush.msra.mxu0 0.0
  %804 = vmatpush.msra.mxu0 0.0
  %805 = vmatpush.msra.mxu0 0.0
  %806 = vmatpush.msra.mxu0 0.0
  %807 = vmatpush.msra.mxu0 0.0
  %808 = vmatpush.msra.mxu0 0.0
  %809 = vmatpush.msra.mxu0 0.0
  %810 = vmatpush.msra.mxu0 %v733
  %811 = vmatmul.f32.gmra.mxu0 %v721
  %v812 = vpop.f32.mrf.mxu0
  %v813 = vadd.f32 0.0, %v812
  %814 = vdwg.mxu0
  %v815 = vadd.f32 %v675, %v753
  %v816 = vadd.f32 %v676, %v773
  %v817 = vadd.f32 %v677, %v793
  %v818 = vadd.f32 %v678, %v813
  %819 = vst [vmem:[#allocation1] ss:$2 sm:$0xff] %v17
  %s820 = scalar_lea.vmem [#allocation1], 16
  %821 = vst [vmem:[%s820] ss:$2 sm:$0xff] %v18
  %v822 = vld.sshfl [vmem:[#allocation1] sm:$0xff pattern:$0x75316420]
  %v823 = vld.sshfl [vmem:[#allocation1 + $0x8] sm:$0xff pattern:$0x75316420]
  %v824 = vld.sshfl [vmem:[#allocation1 + $0x10] sm:$0xff pattern:$0x75316420]
  %v825 = vld.sshfl [vmem:[#allocation1 + $0x18] sm:$0xff pattern:$0x75316420]
  %830 = vrot.lane.b32.xlu0 %v822, 113
  %v831 = vpop.permute.xlu0 %830
  %832 = vrot.lane.b32.xlu0 %v823, 113
  %v833 = vpop.permute.xlu0 %832
  %834 = vrot.lane.b32.xlu0 %v824, 113
  %v835 = vpop.permute.xlu0 %834
  %836 = vrot.lane.b32.xlu0 %v825, 113
  %v837 = vpop.permute.xlu0 %836
  %vm838 = vcmp.lt.s32.totalorder %v41, 113
  %v839 = vsel %vm838, %v835, %v837
  %v840 = vsel %vm838, %v833, %v835
  %v841 = vsel %vm838, %v831, %v833
  %v842 = vsel %vm838, %v837, %v831
  %s843 = scalar_lea.vmem %s3, 6
  %v844 = vld [vmem:[%s843] ss:$8 sm:$0xf]
  %v846 = vperm.slane %v844, 0
  %v847 = vperm.slane %v844, 1
  %v848 = vperm.slane %v844, 2
  %v849 = vperm.slane %v844, 3
  %v854 = vmul.f32 %v841, %v846
  %v855 = vmul.f32 %v840, %v847
  %v856 = vmul.f32 %v839, %v848
  %v857 = vmul.f32 %v842, %v849
  %s858 = scalar_lea.vmem %s1, 24
  %v859 = vld [vmem:[%s858] sm:$0xf]
  %v861 = vsel %vm103, %v859, 0
  %v864 = vsel %vm107, %v854, 0
  %v867 = vsel %vm107, %v855, 0
  %v870 = vsel %vm107, %v856, 0
  %v873 = vsel %vm107, %v857, 0
  %875 = vmatpush.msra.mxu0 0.0
  %876 = vmatpush.msra.mxu0 0.0
  %877 = vmatpush.msra.mxu0 0.0
  %878 = vmatpush.msra.mxu0 0.0
  %879 = vmatpush.msra.mxu0 0.0
  %880 = vmatpush.msra.mxu0 0.0
  %881 = vmatpush.msra.mxu0 0.0
  %882 = vmatpush.msra.mxu0 0.0
  %883 = vmatpush.msra.mxu0 0.0
  %884 = vmatpush.msra.mxu0 0.0
  %885 = vmatpush.msra.mxu0 0.0
  %886 = vmatpush.msra.mxu0 0.0
  %887 = vmatpush.msra.mxu0 0.0
  %888 = vmatpush.msra.mxu0 0.0
  %889 = vmatpush.msra.mxu0 0.0
  %890 = vmatpush.msra.mxu0 %v864
  %891 = vmatmul.f32.gmra.mxu0 %v861
  %v892 = vpop.f32.mrf.mxu0
  %v893 = vadd.f32 0.0, %v892
  %894 = vdwg.mxu0
  %895 = vmatpush.msra.mxu0 0.0
  %896 = vmatpush.msra.mxu0 0.0
  %897 = vmatpush.msra.mxu0 0.0
  %898 = vmatpush.msra.mxu0 0.0
  %899 = vmatpush.msra.mxu0 0.0
  %900 = vmatpush.msra.mxu0 0.0
  %901 = vmatpush.msra.mxu0 0.0
  %902 = vmatpush.msra.mxu0 0.0
  %903 = vmatpush.msra.mxu0 0.0
  %904 = vmatpush.msra.mxu0 0.0
  %905 = vmatpush.msra.mxu0 0.0
  %906 = vmatpush.msra.mxu0 0.0
  %907 = vmatpush.msra.mxu0 0.0
  %908 = vmatpush.msra.mxu0 0.0
  %909 = vmatpush.msra.mxu0 0.0
  %910 = vmatpush.msra.mxu0 %v867
  %911 = vmatmul.f32.gmra.mxu0 %v861
  %v912 = vpop.f32.mrf.mxu0
  %v913 = vadd.f32 0.0, %v912
  %914 = vdwg.mxu0
  %915 = vmatpush.msra.mxu0 0.0
  %916 = vmatpush.msra.mxu0 0.0
  %917 = vmatpush.msra.mxu0 0.0
  %918 = vmatpush.msra.mxu0 0.0
  %919 = vmatpush.msra.mxu0 0.0
  %920 = vmatpush.msra.mxu0 0.0
  %921 = vmatpush.msra.mxu0 0.0
  %922 = vmatpush.msra.mxu0 0.0
  %923 = vmatpush.msra.mxu0 0.0
  %924 = vmatpush.msra.mxu0 0.0
  %925 = vmatpush.msra.mxu0 0.0
  %926 = vmatpush.msra.mxu0 0.0
  %927 = vmatpush.msra.mxu0 0.0
  %928 = vmatpush.msra.mxu0 0.0
  %929 = vmatpush.msra.mxu0 0.0
  %930 = vmatpush.msra.mxu0 %v870
  %931 = vmatmul.f32.gmra.mxu0 %v861
  %v932 = vpop.f32.mrf.mxu0
  %v933 = vadd.f32 0.0, %v932
  %934 = vdwg.mxu0
  %935 = vmatpush.msra.mxu0 0.0
  %936 = vmatpush.msra.mxu0 0.0
  %937 = vmatpush.msra.mxu0 0.0
  %938 = vmatpush.msra.mxu0 0.0
  %939 = vmatpush.msra.mxu0 0.0
  %940 = vmatpush.msra.mxu0 0.0
  %941 = vmatpush.msra.mxu0 0.0
  %942 = vmatpush.msra.mxu0 0.0
  %943 = vmatpush.msra.mxu0 0.0
  %944 = vmatpush.msra.mxu0 0.0
  %945 = vmatpush.msra.mxu0 0.0
  %946 = vmatpush.msra.mxu0 0.0
  %947 = vmatpush.msra.mxu0 0.0
  %948 = vmatpush.msra.mxu0 0.0
  %949 = vmatpush.msra.mxu0 0.0
  %950 = vmatpush.msra.mxu0 %v873
  %951 = vmatmul.f32.gmra.mxu0 %v861
  %v952 = vpop.f32.mrf.mxu0
  %v953 = vadd.f32 0.0, %v952
  %954 = vdwg.mxu0
  %v955 = vadd.f32 %v815, %v893
  %v956 = vadd.f32 %v816, %v913
  %v957 = vadd.f32 %v817, %v933
  %v958 = vadd.f32 %v818, %v953
  %959 = vst [vmem:[#allocation1] ss:$2 sm:$0xff] %v17
  %s960 = scalar_lea.vmem [#allocation1], 16
  %961 = vst [vmem:[%s960] ss:$2 sm:$0xff] %v18
  %v962 = vld.sshfl [vmem:[#allocation1] sm:$0xff pattern:$0x75316420]
  %v963 = vld.sshfl [vmem:[#allocation1 + $0x8] sm:$0xff pattern:$0x75316420]
  %v964 = vld.sshfl [vmem:[#allocation1 + $0x10] sm:$0xff pattern:$0x75316420]
  %v965 = vld.sshfl [vmem:[#allocation1 + $0x18] sm:$0xff pattern:$0x75316420]
  %970 = vrot.lane.b32.xlu0 %v962, 112
  %v971 = vpop.permute.xlu0 %970
  %972 = vrot.lane.b32.xlu0 %v963, 112
  %v973 = vpop.permute.xlu0 %972
  %974 = vrot.lane.b32.xlu0 %v964, 112
  %v975 = vpop.permute.xlu0 %974
  %976 = vrot.lane.b32.xlu0 %v965, 112
  %v977 = vpop.permute.xlu0 %976
  %vm978 = vcmp.lt.s32.totalorder %v41, 112
  %v979 = vsel %vm978, %v975, %v977
  %v980 = vsel %vm978, %v973, %v975
  %v981 = vsel %vm978, %v971, %v973
  %v982 = vsel %vm978, %v977, %v971
  %s983 = scalar_lea.vmem %s3, 7
  %v984 = vld [vmem:[%s983] ss:$8 sm:$0xf]
  %v986 = vperm.slane %v984, 0
  %v987 = vperm.slane %v984, 1
  %v988 = vperm.slane %v984, 2
  %v989 = vperm.slane %v984, 3
  %v994 = vmul.f32 %v981, %v986
  %v995 = vmul.f32 %v980, %v987
  %v996 = vmul.f32 %v979, %v988
  %v997 = vmul.f32 %v982, %v989
  %s998 = scalar_lea.vmem %s1, 28
  %v999 = vld [vmem:[%s998] sm:$0xf]
  %v1001 = vsel %vm103, %v999, 0
  %v1004 = vsel %vm107, %v994, 0
  %v1007 = vsel %vm107, %v995, 0
  %v1010 = vsel %vm107, %v996, 0
  %v1013 = vsel %vm107, %v997, 0
  %1015 = vmatpush.msra.mxu0 0.0
  %1016 = vmatpush.msra.mxu0 0.0
  %1017 = vmatpush.msra.mxu0 0.0
  %1018 = vmatpush.msra.mxu0 0.0
  %1019 = vmatpush.msra.mxu0 0.0
  %1020 = vmatpush.msra.mxu0 0.0
  %1021 = vmatpush.msra.mxu0 0.0
  %1022 = vmatpush.msra.mxu0 0.0
  %1023 = vmatpush.msra.mxu0 0.0
  %1024 = vmatpush.msra.mxu0 0.0
  %1025 = vmatpush.msra.mxu0 0.0
  %1026 = vmatpush.msra.mxu0 0.0
  %1027 = vmatpush.msra.mxu0 0.0
  %1028 = vmatpush.msra.mxu0 0.0
  %1029 = vmatpush.msra.mxu0 0.0
  %1030 = vmatpush.msra.mxu0 %v1004
  %1031 = vmatmul.f32.gmra.mxu0 %v1001
  %v1032 = vpop.f32.mrf.mxu0
  %v1033 = vadd.f32 0.0, %v1032
  %1034 = vdwg.mxu0
  %1035 = vmatpush.msra.mxu0 0.0
  %1036 = vmatpush.msra.mxu0 0.0
  %1037 = vmatpush.msra.mxu0 0.0
  %1038 = vmatpush.msra.mxu0 0.0
  %1039 = vmatpush.msra.mxu0 0.0
  %1040 = vmatpush.msra.mxu0 0.0
  %1041 = vmatpush.msra.mxu0 0.0
  %1042 = vmatpush.msra.mxu0 0.0
  %1043 = vmatpush.msra.mxu0 0.0
  %1044 = vmatpush.msra.mxu0 0.0
  %1045 = vmatpush.msra.mxu0 0.0
  %1046 = vmatpush.msra.mxu0 0.0
  %1047 = vmatpush.msra.mxu0 0.0
  %1048 = vmatpush.msra.mxu0 0.0
  %1049 = vmatpush.msra.mxu0 0.0
  %1050 = vmatpush.msra.mxu0 %v1007
  %1051 = vmatmul.f32.gmra.mxu0 %v1001
  %v1052 = vpop.f32.mrf.mxu0
  %v1053 = vadd.f32 0.0, %v1052
  %1054 = vdwg.mxu0
  %1055 = vmatpush.msra.mxu0 0.0
  %1056 = vmatpush.msra.mxu0 0.0
  %1057 = vmatpush.msra.mxu0 0.0
  %1058 = vmatpush.msra.mxu0 0.0
  %1059 = vmatpush.msra.mxu0 0.0
  %1060 = vmatpush.msra.mxu0 0.0
  %1061 = vmatpush.msra.mxu0 0.0
  %1062 = vmatpush.msra.mxu0 0.0
  %1063 = vmatpush.msra.mxu0 0.0
  %1064 = vmatpush.msra.mxu0 0.0
  %1065 = vmatpush.msra.mxu0 0.0
  %1066 = vmatpush.msra.mxu0 0.0
  %1067 = vmatpush.msra.mxu0 0.0
  %1068 = vmatpush.msra.mxu0 0.0
  %1069 = vmatpush.msra.mxu0 0.0
  %1070 = vmatpush.msra.mxu0 %v1010
  %1071 = vmatmul.f32.gmra.mxu0 %v1001
  %v1072 = vpop.f32.mrf.mxu0
  %v1073 = vadd.f32 0.0, %v1072
  %1074 = vdwg.mxu0
  %1075 = vmatpush.msra.mxu0 0.0
  %1076 = vmatpush.msra.mxu0 0.0
  %1077 = vmatpush.msra.mxu0 0.0
  %1078 = vmatpush.msra.mxu0 0.0
  %1079 = vmatpush.msra.mxu0 0.0
  %1080 = vmatpush.msra.mxu0 0.0
  %1081 = vmatpush.msra.mxu0 0.0
  %1082 = vmatpush.msra.mxu0 0.0
  %1083 = vmatpush.msra.mxu0 0.0
  %1084 = vmatpush.msra.mxu0 0.0
  %1085 = vmatpush.msra.mxu0 0.0
  %1086 = vmatpush.msra.mxu0 0.0
  %1087 = vmatpush.msra.mxu0 0.0
  %1088 = vmatpush.msra.mxu0 0.0
  %1089 = vmatpush.msra.mxu0 0.0
  %1090 = vmatpush.msra.mxu0 %v1013
  %1091 = vmatmul.f32.gmra.mxu0 %v1001
  %v1092 = vpop.f32.mrf.mxu0
  %v1093 = vadd.f32 0.0, %v1092
  %1094 = vdwg.mxu0
  %v1095 = vadd.f32 %v955, %v1033
  %v1096 = vadd.f32 %v956, %v1053
  %v1097 = vadd.f32 %v957, %v1073
  %v1098 = vadd.f32 %v958, %v1093
  %1099 = vst [vmem:[#allocation1] ss:$2 sm:$0xff] %v17
  %s1100 = scalar_lea.vmem [#allocation1], 16
  %1101 = vst [vmem:[%s1100] ss:$2 sm:$0xff] %v18
  %v1102 = vld.sshfl [vmem:[#allocation1] sm:$0xff pattern:$0x75316420]
  %v1103 = vld.sshfl [vmem:[#allocation1 + $0x8] sm:$0xff pattern:$0x75316420]
  %v1104 = vld.sshfl [vmem:[#allocation1 + $0x10] sm:$0xff pattern:$0x75316420]
  %v1105 = vld.sshfl [vmem:[#allocation1 + $0x18] sm:$0xff pattern:$0x75316420]
  %1110 = vrot.lane.b32.xlu0 %v1102, 111
  %v1111 = vpop.permute.xlu0 %1110
  %1112 = vrot.lane.b32.xlu0 %v1103, 111
  %v1113 = vpop.permute.xlu0 %1112
  %1114 = vrot.lane.b32.xlu0 %v1104, 111
  %v1115 = vpop.permute.xlu0 %1114
  %1116 = vrot.lane.b32.xlu0 %v1105, 111
  %v1117 = vpop.permute.xlu0 %1116
  %vm1118 = vcmp.lt.s32.totalorder %v41, 111
  %v1119 = vsel %vm1118, %v1115, %v1117
  %v1120 = vsel %vm1118, %v1113, %v1115
  %v1121 = vsel %vm1118, %v1111, %v1113
  %v1122 = vsel %vm1118, %v1117, %v1111
  %s1123 = scalar_lea.vmem %s3, 32
  %v1124 = vld [vmem:[%s1123] ss:$8 sm:$0xf]
  %v1126 = vperm.slane %v1124, 0
  %v1127 = vperm.slane %v1124, 1
  %v1128 = vperm.slane %v1124, 2
  %v1129 = vperm.slane %v1124, 3
  %v1134 = vmul.f32 %v1121, %v1126
  %v1135 = vmul.f32 %v1120, %v1127
  %v1136 = vmul.f32 %v1119, %v1128
  %v1137 = vmul.f32 %v1122, %v1129
  %s1138 = scalar_lea.vmem %s1, 32
  %v1139 = vld [vmem:[%s1138] sm:$0xf]
  %v1141 = vsel %vm103, %v1139, 0
  %v1144 = vsel %vm107, %v1134, 0
  %v1147 = vsel %vm107, %v1135, 0
  %v1150 = vsel %vm107, %v1136, 0
  %v1153 = vsel %vm107, %v1137, 0
  %1155 = vmatpush.msra.mxu0 0.0
  %1156 = vmatpush.msra.mxu0 0.0
  %1157 = vmatpush.msra.mxu0 0.0
  %1158 = vmatpush.msra.mxu0 0.0
  %1159 = vmatpush.msra.mxu0 0.0
  %1160 = vmatpush.msra.mxu0 0.0
  %1161 = vmatpush.msra.mxu0 0.0
  %1162 = vmatpush.msra.mxu0 0.0
  %1163 = vmatpush.msra.mxu0 0.0
  %1164 = vmatpush.msra.mxu0 0.0
  %1165 = vmatpush.msra.mxu0 0.0
  %1166 = vmatpush.msra.mxu0 0.0
  %1167 = vmatpush.msra.mxu0 0.0
  %1168 = vmatpush.msra.mxu0 0.0
  %1169 = vmatpush.msra.mxu0 0.0
  %1170 = vmatpush.msra.mxu0 %v1144
  %1171 = vmatmul.f32.gmra.mxu0 %v1141
  %v1172 = vpop.f32.mrf.mxu0
  %v1173 = vadd.f32 0.0, %v1172
  %1174 = vdwg.mxu0
  %1175 = vmatpush.msra.mxu0 0.0
  %1176 = vmatpush.msra.mxu0 0.0
  %1177 = vmatpush.msra.mxu0 0.0
  %1178 = vmatpush.msra.mxu0 0.0
  %1179 = vmatpush.msra.mxu0 0.0
  %1180 = vmatpush.msra.mxu0 0.0
  %1181 = vmatpush.msra.mxu0 0.0
  %1182 = vmatpush.msra.mxu0 0.0
  %1183 = vmatpush.msra.mxu0 0.0
  %1184 = vmatpush.msra.mxu0 0.0
  %1185 = vmatpush.msra.mxu0 0.0
  %1186 = vmatpush.msra.mxu0 0.0
  %1187 = vmatpush.msra.mxu0 0.0
  %1188 = vmatpush.msra.mxu0 0.0
  %1189 = vmatpush.msra.mxu0 0.0
  %1190 = vmatpush.msra.mxu0 %v1147
  %1191 = vmatmul.f32.gmra.mxu0 %v1141
  %v1192 = vpop.f32.mrf.mxu0
  %v1193 = vadd.f32 0.0, %v1192
  %1194 = vdwg.mxu0
  %1195 = vmatpush.msra.mxu0 0.0
  %1196 = vmatpush.msra.mxu0 0.0
  %1197 = vmatpush.msra.mxu0 0.0
  %1198 = vmatpush.msra.mxu0 0.0
  %1199 = vmatpush.msra.mxu0 0.0
  %1200 = vmatpush.msra.mxu0 0.0
  %1201 = vmatpush.msra.mxu0 0.0
  %1202 = vmatpush.msra.mxu0 0.0
  %1203 = vmatpush.msra.mxu0 0.0
  %1204 = vmatpush.msra.mxu0 0.0
  %1205 = vmatpush.msra.mxu0 0.0
  %1206 = vmatpush.msra.mxu0 0.0
  %1207 = vmatpush.msra.mxu0 0.0
  %1208 = vmatpush.msra.mxu0 0.0
  %1209 = vmatpush.msra.mxu0 0.0
  %1210 = vmatpush.msra.mxu0 %v1150
  %1211 = vmatmul.f32.gmra.mxu0 %v1141
  %v1212 = vpop.f32.mrf.mxu0
  %v1213 = vadd.f32 0.0, %v1212
  %1214 = vdwg.mxu0
  %1215 = vmatpush.msra.mxu0 0.0
  %1216 = vmatpush.msra.mxu0 0.0
  %1217 = vmatpush.msra.mxu0 0.0
  %1218 = vmatpush.msra.mxu0 0.0
  %1219 = vmatpush.msra.mxu0 0.0
  %1220 = vmatpush.msra.mxu0 0.0
  %1221 = vmatpush.msra.mxu0 0.0
  %1222 = vmatpush.msra.mxu0 0.0
  %1223 = vmatpush.msra.mxu0 0.0
  %1224 = vmatpush.msra.mxu0 0.0
  %1225 = vmatpush.msra.mxu0 0.0
  %1226 = vmatpush.msra.mxu0 0.0
  %1227 = vmatpush.msra.mxu0 0.0
  %1228 = vmatpush.msra.mxu0 0.0
  %1229 = vmatpush.msra.mxu0 0.0
  %1230 = vmatpush.msra.mxu0 %v1153
  %1231 = vmatmul.f32.gmra.mxu0 %v1141
  %v1232 = vpop.f32.mrf.mxu0
  %v1233 = vadd.f32 0.0, %v1232
  %1234 = vdwg.mxu0
  %v1235 = vadd.f32 %v1095, %v1173
  %v1236 = vadd.f32 %v1096, %v1193
  %v1237 = vadd.f32 %v1097, %v1213
  %v1238 = vadd.f32 %v1098, %v1233
  %v1239 = vld [vmem:[%s2] sm:$0xf]
  %1241 = vset.pattern.permute.xlu0 0
  %1242 = vperm.xlu0 %1241, %v1239
  %v1243 = vpop.permute.xlu0 %1242
  %v1245 = vadd.f32 %v1235, %v1243
  %v1246 = vadd.f32 %v1236, %v1243
  %v1247 = vadd.f32 %v1237, %v1243
  %v1248 = vadd.f32 %v1238, %v1243
  %v1249 = vmul.f32 %v1245, 0.5
  %v1250 = vmul.f32 %v1246, 0.5
  %v1251 = vmul.f32 %v1247, 0.5
  %v1252 = vmul.f32 %v1248, 0.5
  %v1253 = vmul.f32 %v1245, 0.70710677
  %v1254 = vmul.f32 %v1246, 0.70710677
  %v1255 = vmul.f32 %v1247, 0.70710677
  %v1256 = vmul.f32 %v1248, 0.70710677
  %v1257 = vmul.f32 %v1253, %v1253
  %v1258 = vmin.f32 16.0, %v1257
  %v1259 = vmul.f32 %v1258, 2.1237322e-06
  %v1260 = vadd.f32 %v1259, 0.00028619796
  %v1261 = vmul.f32 %v1258, %v1260
  %v1262 = vadd.f32 %v1261, 0.0036580483
  %v1263 = vmul.f32 %v1258, %v1262
  %v1264 = vadd.f32 %v1263, 0.05243302
  %v1265 = vmul.f32 %v1258, %v1264
  %v1266 = vadd.f32 %v1265, 0.18741608
  %v1267 = vmul.f32 %v1258, %v1266
  %v1268 = vadd.f32 %v1267, 1.1283791
  %v1269 = vmul.f32 %v1253, %v1268
  %v1270 = vmul.f32 %v1258, 3.8918573e-05
  %v1271 = vadd.f32 %v1270, 0.001143296
  %v1272 = vmul.f32 %v1258, %v1271
  %v1273 = vadd.f32 %v1272, 0.014752088
  %v1274 = vmul.f32 %v1258, %v1273
  %v1275 = vadd.f32 %v1274, 0.112945676
  %v1276 = vmul.f32 %v1258, %v1275
  %v1277 = vadd.f32 %v1276, 0.4994258
  %v1278 = vmul.f32 %v1258, %v1277
  %v1279 = vadd.f32 %v1278, 1.0
  %v1280 = vrcp.pop %v1279
  %v1281 = vmul.f32 %v1279, %v1280
  %v1282 = vsub.f32 1.0, %v1281
  %v1283 = vmul.f32 %v1280, %v1282
  %v1284 = vadd.f32 %v1280, %v1283
  %vm1285 = vweird.f32 %v1279
  %vm1286 = vweird.f32 %v1280
  %vm1287 = vmor %vm1285, %vm1286
  %v1288 = vsel %vm1287, %v1280, %v1284
  %v1289 = vand.u32 2147483647, %v1279
  %vm1290 = vcmp.eq.f32.partialorder %v1289, 8.507059e+37
  %v1291 = vand.u32 %v1279, 2147483648
  %v1292 = vor.u32 1.1754944e-38, %v1291
  %v1293 = vsel %vm1290, %v1292, %v1288
  %v1294 = vmul.f32 %v1269, %v1293
  %v1295 = vmin.f32 %v1294, 1.0
  %v1296 = vmax.f32 %v1295, -1.0
  %v1297 = vmul.f32 %v1254, %v1254
  %v1298 = vmin.f32 16.0, %v1297
  %v1299 = vmul.f32 %v1298, 2.1237322e-06
  %v1300 = vadd.f32 %v1299, 0.00028619796
  %v1301 = vmul.f32 %v1298, %v1300
  %v1302 = vadd.f32 %v1301, 0.0036580483
  %v1303 = vmul.f32 %v1298, %v1302
  %v1304 = vadd.f32 %v1303, 0.05243302
  %v1305 = vmul.f32 %v1298, %v1304
  %v1306 = vadd.f32 %v1305, 0.18741608
  %v1307 = vmul.f32 %v1298, %v1306
  %v1308 = vadd.f32 %v1307, 1.1283791
  %v1309 = vmul.f32 %v1254, %v1308
  %v1310 = vmul.f32 %v1298, 3.8918573e-05
  %v1311 = vadd.f32 %v1310, 0.001143296
  %v1312 = vmul.f32 %v1298, %v1311
  %v1313 = vadd.f32 %v1312, 0.014752088
  %v1314 = vmul.f32 %v1298, %v1313
  %v1315 = vadd.f32 %v1314, 0.112945676
  %v1316 = vmul.f32 %v1298, %v1315
  %v1317 = vadd.f32 %v1316, 0.4994258
  %v1318 = vmul.f32 %v1298, %v1317
  %v1319 = vadd.f32 %v1318, 1.0
  %v1320 = vrcp.pop %v1319
  %v1321 = vmul.f32 %v1319, %v1320
  %v1322 = vsub.f32 1.0, %v1321
  %v1323 = vmul.f32 %v1320, %v1322
  %v1324 = vadd.f32 %v1320, %v1323
  %vm1325 = vweird.f32 %v1319
  %vm1326 = vweird.f32 %v1320
  %vm1327 = vmor %vm1325, %vm1326
  %v1328 = vsel %vm1327, %v1320, %v1324
  %v1329 = vand.u32 2147483647, %v1319
  %vm1330 = vcmp.eq.f32.partialorder %v1329, 8.507059e+37
  %v1331 = vand.u32 %v1319, 2147483648
  %v1332 = vor.u32 1.1754944e-38, %v1331
  %v1333 = vsel %vm1330, %v1332, %v1328
  %v1334 = vmul.f32 %v1309, %v1333
  %v1335 = vmin.f32 %v1334, 1.0
  %v1336 = vmax.f32 %v1335, -1.0
  %v1337 = vmul.f32 %v1255, %v1255
  %v1338 = vmin.f32 16.0, %v1337
  %v1339 = vmul.f32 %v1338, 2.1237322e-06
  %v1340 = vadd.f32 %v1339, 0.00028619796
  %v1341 = vmul.f32 %v1338, %v1340
  %v1342 = vadd.f32 %v1341, 0.0036580483
  %v1343 = vmul.f32 %v1338, %v1342
  %v1344 = vadd.f32 %v1343, 0.05243302
  %v1345 = vmul.f32 %v1338, %v1344
  %v1346 = vadd.f32 %v1345, 0.18741608
  %v1347 = vmul.f32 %v1338, %v1346
  %v1348 = vadd.f32 %v1347, 1.1283791
  %v1349 = vmul.f32 %v1255, %v1348
  %v1350 = vmul.f32 %v1338, 3.8918573e-05
  %v1351 = vadd.f32 %v1350, 0.001143296
  %v1352 = vmul.f32 %v1338, %v1351
  %v1353 = vadd.f32 %v1352, 0.014752088
  %v1354 = vmul.f32 %v1338, %v1353
  %v1355 = vadd.f32 %v1354, 0.112945676
  %v1356 = vmul.f32 %v1338, %v1355
  %v1357 = vadd.f32 %v1356, 0.4994258
  %v1358 = vmul.f32 %v1338, %v1357
  %v1359 = vadd.f32 %v1358, 1.0
  %v1360 = vrcp.pop %v1359
  %v1361 = vmul.f32 %v1359, %v1360
  %v1362 = vsub.f32 1.0, %v1361
  %v1363 = vmul.f32 %v1360, %v1362
  %v1364 = vadd.f32 %v1360, %v1363
  %vm1365 = vweird.f32 %v1359
  %vm1366 = vweird.f32 %v1360
  %vm1367 = vmor %vm1365, %vm1366
  %v1368 = vsel %vm1367, %v1360, %v1364
  %v1369 = vand.u32 2147483647, %v1359
  %vm1370 = vcmp.eq.f32.partialorder %v1369, 8.507059e+37
  %v1371 = vand.u32 %v1359, 2147483648
  %v1372 = vor.u32 1.1754944e-38, %v1371
  %v1373 = vsel %vm1370, %v1372, %v1368
  %v1374 = vmul.f32 %v1349, %v1373
  %v1375 = vmin.f32 %v1374, 1.0
  %v1376 = vmax.f32 %v1375, -1.0
  %v1377 = vmul.f32 %v1256, %v1256
  %v1378 = vmin.f32 16.0, %v1377
  %v1379 = vmul.f32 %v1378, 2.1237322e-06
  %v1380 = vadd.f32 %v1379, 0.00028619796
  %v1381 = vmul.f32 %v1378, %v1380
  %v1382 = vadd.f32 %v1381, 0.0036580483
  %v1383 = vmul.f32 %v1378, %v1382
  %v1384 = vadd.f32 %v1383, 0.05243302
  %v1385 = vmul.f32 %v1378, %v1384
  %v1386 = vadd.f32 %v1385, 0.18741608
  %v1387 = vmul.f32 %v1378, %v1386
  %v1388 = vadd.f32 %v1387, 1.1283791
  %v1389 = vmul.f32 %v1256, %v1388
  %v1390 = vmul.f32 %v1378, 3.8918573e-05
  %v1391 = vadd.f32 %v1390, 0.001143296
  %v1392 = vmul.f32 %v1378, %v1391
  %v1393 = vadd.f32 %v1392, 0.014752088
  %v1394 = vmul.f32 %v1378, %v1393
  %v1395 = vadd.f32 %v1394, 0.112945676
  %v1396 = vmul.f32 %v1378, %v1395
  %v1397 = vadd.f32 %v1396, 0.4994258
  %v1398 = vmul.f32 %v1378, %v1397
  %v1399 = vadd.f32 %v1398, 1.0
  %v1400 = vrcp.pop %v1399
  %v1401 = vmul.f32 %v1399, %v1400
  %v1402 = vsub.f32 1.0, %v1401
  %v1403 = vmul.f32 %v1400, %v1402
  %v1404 = vadd.f32 %v1400, %v1403
  %vm1405 = vweird.f32 %v1399
  %vm1406 = vweird.f32 %v1400
  %vm1407 = vmor %vm1405, %vm1406
  %v1408 = vsel %vm1407, %v1400, %v1404
  %v1409 = vand.u32 2147483647, %v1399
  %vm1410 = vcmp.eq.f32.partialorder %v1409, 8.507059e+37
  %v1411 = vand.u32 %v1399, 2147483648
  %v1412 = vor.u32 1.1754944e-38, %v1411
  %v1413 = vsel %vm1410, %v1412, %v1408
  %v1414 = vmul.f32 %v1389, %v1413
  %v1415 = vmin.f32 %v1414, 1.0
  %v1416 = vmax.f32 %v1415, -1.0
  %v1417 = vadd.f32 %v1296, 1.0
  %v1418 = vadd.f32 %v1336, 1.0
  %v1419 = vadd.f32 %v1376, 1.0
  %v1420 = vadd.f32 %v1416, 1.0
  %v1421 = vmul.f32 %v1249, %v1417
  %v1422 = vmul.f32 %v1250, %v1418
  %v1423 = vmul.f32 %v1251, %v1419
  %v1424 = vmul.f32 %v1252, %v1420
  %v1429 = vrot.slane %v1422, 4
  %v1430 = vrot.slane %v1424, 4
  %v1431 = vsel %vm107, %v1421, %v1429
  %v1432 = vsel %vm107, %v1423, %v1430
  %1435 = vst [vmem:[%s4] sm:$0xff] %v1431
  %1436 = vst [vmem:[%s4 + $0x8] sm:$0xff] %v1432
  // Predicated region
  $region18: #{feedforward_forward.1} parent=0 // pred_check
    _
  $region19: #{feedforward_forward.1} parent=0 // pred_check_branch
    %1438 = sbr.rel (0) target = $region21
  $region20: #{feedforward_forward.1} parent=0 // pred_region
    _
  $region21: #{feedforward_forward.1} parent=0 // pred_fallthru
    _
  // Predicated region
  $region22: #{feedforward_forward.1} parent=0 // pred_check
    _
  $region23: #{feedforward_forward.1} parent=0 // pred_check_branch
    %1440 = sbr.rel (0) target = $region25
  $region24: #{feedforward_forward.1} parent=0 // pred_region
    _
  $region25: #{feedforward_forward.1} parent=0 // pred_fallthru
    _

</llo_original>
